<compile_context>
chip_gen: v6e
topology: v6e:2x2x1
jax: 0.10.0
libtpu: 0.0.40
codegen_flags: <defaults>
</compile_context>

<pallas_src>
import functools

import jax
import jax.numpy as jnp
import numpy as np
from jax import lax
from jax.experimental import pallas as pl
from jax.experimental.pallas import tpu as pltpu

EPS = 1e-5


# ---------------------------------------------------------------------------
# Fused Pallas kernel
# ---------------------------------------------------------------------------
def _fused_block_kernel(use_skip,
                        xm_ref, xt_ref, xb_ref,          # activations (bf16)
                        w1_ref, t1_ref, w2_ref, t2_ref,  # folded weights/shifts
                        w3_ref, t3_ref,
                        o_ref,                           # output tile (f32)
                        h1p_ref):                        # VMEM scratch (bf16)
    r = pl.program_id(1)
    n_rt = pl.num_programs(1)
    TH, W, C = xm_ref.shape
    Cm = w1_ref.shape[1]
    cdt = h1p_ref.dtype

    w1 = w1_ref[...]
    t1 = t1_ref[...]                                     # (1, Cm) f32

    def conv1(x2d):
        # 1x1 conv with BN scale folded into w1; shift + ReLU in f32.
        h = jnp.dot(x2d, w1, preferred_element_type=jnp.float32) + t1
        return jnp.maximum(h, 0.0)

    # --- stage 1: 1x1 conv + BN + ReLU (main rows + 1-row halos) ------------
    x_main = xm_ref[...]                                 # (TH, W, C) bf16
    h1_main = conv1(x_main.reshape(TH * W, C))           # (TH*W, Cm) f32
    h1_top = conv1(xt_ref[0])                            # (W, Cm)
    h1_bot = conv1(xb_ref[0])                            # (W, Cm)

    # Halo rows that fall on the image boundary must be zero-padding of h1
    # (NOT relu(shift) of a zero x row), and must not leak across tiles/batch.
    h1_top = jnp.where(r == 0, 0.0, h1_top)
    h1_bot = jnp.where(r == n_rt - 1, 0.0, h1_bot)

    # --- assemble zero-padded h1 tile (TH+2, W+2, Cm) in VMEM scratch -------
    h1p_ref[...] = jnp.zeros_like(h1p_ref)
    h1p_ref[0:1, 1:W + 1, :] = h1_top[None].astype(cdt)
    h1p_ref[1:TH + 1, 1:W + 1, :] = h1_main.reshape(TH, W, Cm).astype(cdt)
    h1p_ref[TH + 1:TH + 2, 1:W + 1, :] = h1_bot[None].astype(cdt)

    # --- stage 2: 3x3 conv as 9 shifted matmuls (im2col never hits HBM) -----
    acc = jnp.zeros((TH * W, Cm), jnp.float32)
    for kh in range(3):
        for kw in range(3):
            tap = h1p_ref[kh:kh + TH, kw:kw + W, :].reshape(TH * W, Cm)
            acc = acc + jnp.dot(tap, w2_ref[kh * 3 + kw],
                                preferred_element_type=jnp.float32)
    h2 = jnp.maximum(acc + t2_ref[...], 0.0).astype(cdt)  # (TH*W, Cm)

    # --- stage 3: 1x1 conv + BN (+ skip) + ReLU ------------------------------
    h3 = jnp.dot(h2, w3_ref[...], preferred_element_type=jnp.float32)
    h3 = h3 + t3_ref[...]
    if use_skip:
        h3 = h3 + x_main.reshape(TH * W, C).astype(jnp.float32)
    o_ref[...] = jnp.maximum(h3, 0.0).reshape(TH, W, C).astype(o_ref.dtype)


# ---------------------------------------------------------------------------
# Parameter construction (deterministic, PyTorch-layout weights)
# ---------------------------------------------------------------------------
def init_params(key, num_filters):
    c = num_filters
    cm = c // 2
    ks = jax.random.split(key, 6)

    def bn(n, seed):
        k = jax.random.split(ks[seed], 4)
        return dict(
            gamma=1.0 + 0.1 * jax.random.normal(k[0], (n,), jnp.float32),
            beta=0.1 * jax.random.normal(k[1], (n,), jnp.float32),
            mean=0.1 * jax.random.normal(k[2], (n,), jnp.float32),
            var=1.0 + 0.1 * jax.random.uniform(k[3], (n,), jnp.float32),
        )

    return dict(
        conv1_w=0.2 * jax.random.normal(ks[0], (cm, c, 1, 1), jnp.float32),
        conv1_b=0.1 * jax.random.normal(ks[1], (cm,), jnp.float32),
        conv2_w=0.2 * jax.random.normal(ks[2], (cm, cm, 3, 3), jnp.float32),
        conv2_b=0.1 * jax.random.normal(ks[3], (cm,), jnp.float32),
        conv3_w=0.2 * jax.random.normal(ks[4], (c, cm, 1, 1), jnp.float32),
        conv3_b=0.1 * jax.random.normal(ks[5], (c,), jnp.float32),
        bn1=bn(cm, 0),
        bn2=bn(cm, 2),
        bn3=bn(c, 4),
    )


def _fold_bn(conv_b, bn):
    # y = ((x@w + b) - mean)/sqrt(var+eps)*gamma + beta = x@(w*scale) + shift
    scale = bn["gamma"] * lax.rsqrt(bn["var"] + EPS)
    shift = (conv_b - bn["mean"]) * scale + bn["beta"]
    return scale, shift


def _pick_row_tile(H, W, C, requested=None, vmem_budget_bytes=24 << 20):
    """Pick a row tile (divisor of H) sized against a conservative VMEM budget.

    Budget is kept well under the default scoped VMEM on every generation
    (incl. v7x's 64 MiB physical / 32 MiB scoped), accounting for the
    double-buffered input/output tiles plus the h1 scratch.
    """
    Cm = max(C // 2, 1)

    def tile_bytes(th):
        x_tile = th * W * C * 2            # bf16 input tile
        halo = 2 * W * C * 2               # two 1-row halo blocks
        out_tile = th * W * C * 4          # f32 output tile
        scratch = (th + 2) * (W + 2) * Cm * 2
        return 2 * (x_tile + halo) + 2 * out_tile + scratch

    th = min(H, requested) if requested is not None else \
        min(H, max(1, 1024 // max(W, 1)))   # target ~512-1024 rows per tile
    while th > 1 and (H % th != 0 or tile_bytes(th) > vmem_budget_bytes):
        th -= 1
    return max(th, 1)


# ---------------------------------------------------------------------------
# Pallas-backed forward (public interface is NCHW, like PyTorch)
# ---------------------------------------------------------------------------
def convolutional_block_pallas(x_nchw, params, use_skip_connection,
                               row_tile=None):
    B, C, H, W = x_nchw.shape
    Cm = C // 2
    TH = _pick_row_tile(H, W, C, row_tile)
    n_rt = H // TH

    # NHWC, bf16 activations for the MXU (halves HBM bytes).
    x = jnp.transpose(x_nchw, (0, 2, 3, 1)).astype(jnp.bfloat16)

    # Fold conv bias + BN into per-output-channel scale/shift; fold the scale
    # into the weights so the kernel epilogue is just add-shift + ReLU.
    s1, t1 = _fold_bn(params["conv1_b"], params["bn1"])
    s2, t2 = _fold_bn(params["conv2_b"], params["bn2"])
    s3, t3 = _fold_bn(params["conv3_b"], params["bn3"])

    w1s = (params["conv1_w"][:, :, 0, 0] * s1[:, None]).T.astype(jnp.bfloat16)
    w2s = (jnp.transpose(params["conv2_w"], (2, 3, 1, 0))     # (kh, kw, ci, co)
           * s2[None, None, None, :]).reshape(9, Cm, Cm).astype(jnp.bfloat16)
    w3s = (params["conv3_w"][:, :, 0, 0] * s3[:, None]).T.astype(jnp.bfloat16)

    t1 = t1[None, :].astype(jnp.float32)   # (1, Cm)
    t2 = t2[None, :].astype(jnp.float32)   # (1, Cm)
    t3 = t3[None, :].astype(jnp.float32)   # (1, C)

    kernel = functools.partial(_fused_block_kernel, bool(use_skip_connection))

    out_nhwc = pl.pallas_call(
        kernel,
        out_shape=jax.ShapeDtypeStruct((B, H, W, C), jnp.float32),
        grid_spec=pltpu.PrefetchScalarGridSpec(
            num_scalar_prefetch=0,
            grid=(B, n_rt),
            in_specs=[
                # main row tile of x
                pl.BlockSpec((None, TH, W, C), lambda b, r: (b, r, 0, 0)),
                # 1-row halo above (clamped at the image top; masked in-kernel)
                pl.BlockSpec((None, 1, W, C),
                             lambda b, r: (b, jnp.maximum(r * TH - 1, 0), 0, 0)),
                # 1-row halo below (clamped at the image bottom; masked in-kernel)
                pl.BlockSpec((None, 1, W, C),
                             lambda b, r: (b, jnp.minimum(r * TH + TH, H - 1), 0, 0)),
                pl.BlockSpec((C, Cm), lambda b, r: (0, 0)),         # w1 (scaled)
                pl.BlockSpec((1, Cm), lambda b, r: (0, 0)),         # t1
                pl.BlockSpec((9, Cm, Cm), lambda b, r: (0, 0, 0)),  # w2 (scaled)
                pl.BlockSpec((1, Cm), lambda b, r: (0, 0)),         # t2
                pl.BlockSpec((Cm, C), lambda b, r: (0, 0)),         # w3 (scaled)
                pl.BlockSpec((1, C), lambda b, r: (0, 0)),          # t3
            ],
            out_specs=pl.BlockSpec((None, TH, W, C), lambda b, r: (b, r, 0, 0)),
            scratch_shapes=[pltpu.VMEM((TH + 2, W + 2, Cm), jnp.bfloat16)],
        ),
        compiler_params=pltpu.CompilerParams(
            dimension_semantics=("parallel", "parallel")),
    )(x, x, x, w1s, t1, w2s, t2, w3s, t3)

    return jnp.transpose(out_nhwc, (0, 3, 1, 2))   # back to NCHW


# ---------------------------------------------------------------------------
# Plain-JAX reference (NCHW, matches PyTorch semantics in eval mode)
# ---------------------------------------------------------------------------
def convolutional_block_reference(x, p, use_skip_connection):
    def conv(x, w, b, pad):
        y = lax.conv_general_dilated(
            x, w, window_strides=(1, 1), padding=pad,
            dimension_numbers=("NCHW", "OIHW", "NCHW"))
        return y + b[None, :, None, None]

    def bn(x, s):
        return ((x - s["mean"][None, :, None, None])
                / jnp.sqrt(s["var"][None, :, None, None] + EPS)
                * s["gamma"][None, :, None, None]
                + s["beta"][None, :, None, None])

    h = jax.nn.relu(bn(conv(x, p["conv1_w"], p["conv1_b"], "VALID"), p["bn1"]))
    h = jax.nn.relu(bn(conv(h, p["conv2_w"], p["conv2_b"], ((1, 1), (1, 1))), p["bn2"]))
    h = bn(conv(h, p["conv3_w"], p["conv3_b"], "VALID"), p["bn3"])
    if use_skip_connection:
        h = h + x
    return jax.nn.relu(h)


# ---------------------------------------------------------------------------
if __name__ == "__main__":
    num_filters = 8
    B, H, W = 2, 16, 16

    key = jax.random.PRNGKey(0)
    k_x, k_p = jax.random.split(key)
    x = jax.random.normal(k_x, (B, num_filters, H, W), jnp.float32)
    params = init_params(k_p, num_filters)

    # Two configs: (skip, multi-row-tile) exercises the cross-tile halo path;
    # (no-skip, auto tile) exercises the single-tile / boundary-only path.
    for use_skip, row_tile in ((True, 4), (False, None)):
        out = jax.block_until_ready(
            convolutional_block_pallas(x, params, use_skip, row_tile=row_tile))
        ref = jax.block_until_ready(
            convolutional_block_reference(x, params, use_skip))
        assert out.shape == (B, num_filters, H, W), out.shape
        # bf16 MXU matmuls vs. a pure-f32 reference -> loose tolerance.
        np.testing.assert_allclose(np.asarray(out), np.asarray(ref),
                                   atol=5e-2, rtol=5e-2)

    print("KERNEL_OK")
</pallas_src>

<mosaic_0001>
module attributes {stable_mosaic.version = 11 : i64} {
  func.func @_fused_block_kernel(%arg0: i32, %arg1: i32, %arg2: memref<1x4x16x8xbf16, #tpu.memory_space<vmem>>, %arg3: memref<1x1x16x8xbf16, #tpu.memory_space<vmem>>, %arg4: memref<1x1x16x8xbf16, #tpu.memory_space<vmem>>, %arg5: memref<8x4xbf16, #tpu.memory_space<vmem>>, %arg6: memref<1x4xf32, #tpu.memory_space<vmem>>, %arg7: memref<9x4x4xbf16, #tpu.memory_space<vmem>>, %arg8: memref<1x4xf32, #tpu.memory_space<vmem>>, %arg9: memref<4x8xbf16, #tpu.memory_space<vmem>>, %arg10: memref<1x8xf32, #tpu.memory_space<vmem>>, %arg11: memref<1x4x16x8xf32, #tpu.memory_space<vmem>>, %arg12: memref<6x18x4xbf16, #tpu.memory_space<vmem>>) attributes {dimension_semantics = [#tpu.dimension_semantics<parallel>, #tpu.dimension_semantics<parallel>], iteration_bounds = array<i64: 2, 4>, scalar_prefetch = 0 : i64, scratch_operands = 1 : i64, tpu.core_type = #tpu.core_type<tc>, window_params = [{transform_indices = @transform_0, window_bounds = array<i64: 1, 4, 16, 8>}, {transform_indices = @transform_1, window_bounds = array<i64: 1, 1, 16, 8>}, {transform_indices = @transform_2, window_bounds = array<i64: 1, 1, 16, 8>}, {pipeline_mode = #tpu.pipeline_mode<synchronous>, transform_indices = @transform_3, window_bounds = array<i64: 8, 4>}, {pipeline_mode = #tpu.pipeline_mode<synchronous>, transform_indices = @transform_4, window_bounds = array<i64: 1, 4>}, {pipeline_mode = #tpu.pipeline_mode<synchronous>, transform_indices = @transform_5, window_bounds = array<i64: 9, 4, 4>}, {pipeline_mode = #tpu.pipeline_mode<synchronous>, transform_indices = @transform_6, window_bounds = array<i64: 1, 4>}, {pipeline_mode = #tpu.pipeline_mode<synchronous>, transform_indices = @transform_7, window_bounds = array<i64: 4, 8>}, {pipeline_mode = #tpu.pipeline_mode<synchronous>, transform_indices = @transform_8, window_bounds = array<i64: 1, 8>}, {transform_indices = @transform_9, window_bounds = array<i64: 1, 4, 16, 8>}]} {
    %c0 = arith.constant 0 : index
    %c0_0 = arith.constant 0 : index
    %0 = vector.load %arg5[%c0, %c0_0] : memref<8x4xbf16, #tpu.memory_space<vmem>>, vector<8x4xbf16>
    %c0_1 = arith.constant 0 : index
    %c0_2 = arith.constant 0 : index
    %1 = vector.load %arg6[%c0_1, %c0_2] : memref<1x4xf32, #tpu.memory_space<vmem>>, vector<1x4xf32>
    %c0_3 = arith.constant 0 : index
    %c0_4 = arith.constant 0 : index
    %c0_5 = arith.constant 0 : index
    %c0_6 = arith.constant 0 : index
    %2 = vector.load %arg2[%c0_3, %c0_4, %c0_5, %c0_6] : memref<1x4x16x8xbf16, #tpu.memory_space<vmem>>, vector<1x4x16x8xbf16>
    %3 = vector.shape_cast %2 : vector<1x4x16x8xbf16> to vector<4x16x8xbf16>
    %4 = vector.shape_cast %3 : vector<4x16x8xbf16> to vector<64x8xbf16>
    %cst = arith.constant dense<0.000000e+00> : vector<64x4xf32>
    %5 = tpu.matmul %4, %0, %cst {dimension_numbers = #tpu.dot_dimension_numbers<[1], [0], [0], [1], [0, 0, 1, 1], [], []>} : vector<64x8xbf16>, vector<8x4xbf16>, vector<64x4xf32> -> vector<64x4xf32>
    %6 = vector.broadcast %1 : vector<1x4xf32> to vector<64x4xf32>
    %7 = arith.addf %5, %6 : vector<64x4xf32>
    %cst_7 = arith.constant 0.000000e+00 : f32
    %8 = vector.broadcast %cst_7 : f32 to vector<64x4xf32>
    %9 = arith.maximumf %7, %8 : vector<64x4xf32>
    %c0_8 = arith.constant 0 : index
    %c0_9 = arith.constant 0 : index
    %c0_10 = arith.constant 0 : index
    %c0_11 = arith.constant 0 : index
    %10 = vector.load %arg3[%c0_8, %c0_9, %c0_10, %c0_11] : memref<1x1x16x8xbf16, #tpu.memory_space<vmem>>, vector<1x1x16x8xbf16>
    %11 = vector.shape_cast %10 : vector<1x1x16x8xbf16> to vector<16x8xbf16>
    %cst_12 = arith.constant dense<0.000000e+00> : vector<16x4xf32>
    %12 = tpu.matmul %11, %0, %cst_12 {dimension_numbers = #tpu.dot_dimension_numbers<[1], [0], [0], [1], [0, 0, 1, 1], [], []>} : vector<16x8xbf16>, vector<8x4xbf16>, vector<16x4xf32> -> vector<16x4xf32>
    %13 = vector.broadcast %1 : vector<1x4xf32> to vector<16x4xf32>
    %14 = arith.addf %12, %13 : vector<16x4xf32>
    %cst_13 = arith.constant 0.000000e+00 : f32
    %15 = vector.broadcast %cst_13 : f32 to vector<16x4xf32>
    %16 = arith.maximumf %14, %15 : vector<16x4xf32>
    %c0_14 = arith.constant 0 : index
    %c0_15 = arith.constant 0 : index
    %c0_16 = arith.constant 0 : index
    %c0_17 = arith.constant 0 : index
    %17 = vector.load %arg4[%c0_14, %c0_15, %c0_16, %c0_17] : memref<1x1x16x8xbf16, #tpu.memory_space<vmem>>, vector<1x1x16x8xbf16>
    %18 = vector.shape_cast %17 : vector<1x1x16x8xbf16> to vector<16x8xbf16>
    %cst_18 = arith.constant dense<0.000000e+00> : vector<16x4xf32>
    %19 = tpu.matmul %18, %0, %cst_18 {dimension_numbers = #tpu.dot_dimension_numbers<[1], [0], [0], [1], [0, 0, 1, 1], [], []>} : vector<16x8xbf16>, vector<8x4xbf16>, vector<16x4xf32> -> vector<16x4xf32>
    %20 = vector.broadcast %1 : vector<1x4xf32> to vector<16x4xf32>
    %21 = arith.addf %19, %20 : vector<16x4xf32>
    %cst_19 = arith.constant 0.000000e+00 : f32
    %22 = vector.broadcast %cst_19 : f32 to vector<16x4xf32>
    %23 = arith.maximumf %21, %22 : vector<16x4xf32>
    %c0_i32 = arith.constant 0 : i32
    %24 = arith.cmpi eq, %arg1, %c0_i32 : i32
    %cst_20 = arith.constant 0.000000e+00 : f32
    %25 = vector.broadcast %cst_20 : f32 to vector<16x4xf32>
    %26 = arith.select %24, %25, %16 : vector<16x4xf32>
    %c3_i32 = arith.constant 3 : i32
    %27 = arith.cmpi eq, %arg1, %c3_i32 : i32
    %cst_21 = arith.constant 0.000000e+00 : f32
    %28 = vector.broadcast %cst_21 : f32 to vector<16x4xf32>
    %29 = arith.select %27, %28, %23 : vector<16x4xf32>
    %cst_22 = arith.constant 0.000000e+00 : bf16
    %30 = vector.broadcast %cst_22 : bf16 to vector<6x18x4xbf16>
    %c0_23 = arith.constant 0 : index
    %c0_24 = arith.constant 0 : index
    %c0_25 = arith.constant 0 : index
    %31 = vector.load %arg12[%c0_23, %c0_24, %c0_25] : memref<6x18x4xbf16, #tpu.memory_space<vmem>>, vector<6x18x4xbf16>
    tpu.vector_store %arg12[%c0_23, %c0_24, %c0_25], %30 {strides = array<i32>} : memref<6x18x4xbf16, #tpu.memory_space<vmem>>, vector<6x18x4xbf16>,
    %32 = vector.shape_cast %26 : vector<16x4xf32> to vector<1x16x4xf32>
    %33 = arith.truncf %32 : vector<1x16x4xf32> to vector<1x16x4xbf16>
    %c0_26 = arith.constant 0 : index
    %c1 = arith.constant 1 : index
    %c0_27 = arith.constant 0 : index
    %34 = vector.load %arg12[%c0_26, %c1, %c0_27] : memref<6x18x4xbf16, #tpu.memory_space<vmem>>, vector<1x16x4xbf16>
    tpu.vector_store %arg12[%c0_26, %c1, %c0_27], %33 {strides = array<i32>} : memref<6x18x4xbf16, #tpu.memory_space<vmem>>, vector<1x16x4xbf16>,
    %35 = vector.shape_cast %9 : vector<64x4xf32> to vector<4x16x4xf32>
    %36 = arith.truncf %35 : vector<4x16x4xf32> to vector<4x16x4xbf16>
    %c1_28 = arith.constant 1 : index
    %c1_29 = arith.constant 1 : index
    %c0_30 = arith.constant 0 : index
    %37 = vector.load %arg12[%c1_28, %c1_29, %c0_30] : memref<6x18x4xbf16, #tpu.memory_space<vmem>>, vector<4x16x4xbf16>
    tpu.vector_store %arg12[%c1_28, %c1_29, %c0_30], %36 {strides = array<i32>} : memref<6x18x4xbf16, #tpu.memory_space<vmem>>, vector<4x16x4xbf16>,
    %38 = vector.shape_cast %29 : vector<16x4xf32> to vector<1x16x4xf32>
    %39 = arith.truncf %38 : vector<1x16x4xf32> to vector<1x16x4xbf16>
    %c5 = arith.constant 5 : index
    %c1_31 = arith.constant 1 : index
    %c0_32 = arith.constant 0 : index
    %40 = vector.load %arg12[%c5, %c1_31, %c0_32] : memref<6x18x4xbf16, #tpu.memory_space<vmem>>, vector<1x16x4xbf16>
    tpu.vector_store %arg12[%c5, %c1_31, %c0_32], %39 {strides = array<i32>} : memref<6x18x4xbf16, #tpu.memory_space<vmem>>, vector<1x16x4xbf16>,
    %cst_33 = arith.constant 0.000000e+00 : f32
    %41 = vector.broadcast %cst_33 : f32 to vector<64x4xf32>
    %c0_34 = arith.constant 0 : index
    %c0_35 = arith.constant 0 : index
    %c0_36 = arith.constant 0 : index
    %42 = vector.load %arg12[%c0_34, %c0_35, %c0_36] : memref<6x18x4xbf16, #tpu.memory_space<vmem>>, vector<4x16x4xbf16>
    %43 = vector.shape_cast %42 : vector<4x16x4xbf16> to vector<64x4xbf16>
    %c0_37 = arith.constant 0 : index
    %c0_38 = arith.constant 0 : index
    %c0_39 = arith.constant 0 : index
    %44 = vector.load %arg7[%c0_37, %c0_38, %c0_39] : memref<9x4x4xbf16, #tpu.memory_space<vmem>>, vector<1x4x4xbf16>
    %45 = vector.shape_cast %44 : vector<1x4x4xbf16> to vector<4x4xbf16>
    %cst_40 = arith.constant dense<0.000000e+00> : vector<64x4xf32>
    %46 = tpu.matmul %43, %45, %cst_40 {dimension_numbers = #tpu.dot_dimension_numbers<[1], [0], [0], [1], [0, 0, 1, 1], [], []>} : vector<64x4xbf16>, vector<4x4xbf16>, vector<64x4xf32> -> vector<64x4xf32>
    %47 = arith.addf %41, %46 : vector<64x4xf32>
    %c0_41 = arith.constant 0 : index
    %c1_42 = arith.constant 1 : index
    %c0_43 = arith.constant 0 : index
    %48 = vector.load %arg12[%c0_41, %c1_42, %c0_43] : memref<6x18x4xbf16, #tpu.memory_space<vmem>>, vector<4x16x4xbf16>
    %49 = vector.shape_cast %48 : vector<4x16x4xbf16> to vector<64x4xbf16>
    %c1_44 = arith.constant 1 : index
    %c0_45 = arith.constant 0 : index
    %c0_46 = arith.constant 0 : index
    %50 = vector.load %arg7[%c1_44, %c0_45, %c0_46] : memref<9x4x4xbf16, #tpu.memory_space<vmem>>, vector<1x4x4xbf16>
    %51 = vector.shape_cast %50 : vector<1x4x4xbf16> to vector<4x4xbf16>
    %cst_47 = arith.constant dense<0.000000e+00> : vector<64x4xf32>
    %52 = tpu.matmul %49, %51, %cst_47 {dimension_numbers = #tpu.dot_dimension_numbers<[1], [0], [0], [1], [0, 0, 1, 1], [], []>} : vector<64x4xbf16>, vector<4x4xbf16>, vector<64x4xf32> -> vector<64x4xf32>
    %53 = arith.addf %47, %52 : vector<64x4xf32>
    %c0_48 = arith.constant 0 : index
    %c2 = arith.constant 2 : index
    %c0_49 = arith.constant 0 : index
    %54 = vector.load %arg12[%c0_48, %c2, %c0_49] : memref<6x18x4xbf16, #tpu.memory_space<vmem>>, vector<4x16x4xbf16>
    %55 = vector.shape_cast %54 : vector<4x16x4xbf16> to vector<64x4xbf16>
    %c2_50 = arith.constant 2 : index
    %c0_51 = arith.constant 0 : index
    %c0_52 = arith.constant 0 : index
    %56 = vector.load %arg7[%c2_50, %c0_51, %c0_52] : memref<9x4x4xbf16, #tpu.memory_space<vmem>>, vector<1x4x4xbf16>
    %57 = vector.shape_cast %56 : vector<1x4x4xbf16> to vector<4x4xbf16>
    %cst_53 = arith.constant dense<0.000000e+00> : vector<64x4xf32>
    %58 = tpu.matmul %55, %57, %cst_53 {dimension_numbers = #tpu.dot_dimension_numbers<[1], [0], [0], [1], [0, 0, 1, 1], [], []>} : vector<64x4xbf16>, vector<4x4xbf16>, vector<64x4xf32> -> vector<64x4xf32>
    %59 = arith.addf %53, %58 : vector<64x4xf32>
    %c1_54 = arith.constant 1 : index
    %c0_55 = arith.constant 0 : index
    %c0_56 = arith.constant 0 : index
    %60 = vector.load %arg12[%c1_54, %c0_55, %c0_56] : memref<6x18x4xbf16, #tpu.memory_space<vmem>>, vector<4x16x4xbf16>
    %61 = vector.shape_cast %60 : vector<4x16x4xbf16> to vector<64x4xbf16>
    %c3 = arith.constant 3 : index
    %c0_57 = arith.constant 0 : index
    %c0_58 = arith.constant 0 : index
    %62 = vector.load %arg7[%c3, %c0_57, %c0_58] : memref<9x4x4xbf16, #tpu.memory_space<vmem>>, vector<1x4x4xbf16>
    %63 = vector.shape_cast %62 : vector<1x4x4xbf16> to vector<4x4xbf16>
    %cst_59 = arith.constant dense<0.000000e+00> : vector<64x4xf32>
    %64 = tpu.matmul %61, %63, %cst_59 {dimension_numbers = #tpu.dot_dimension_numbers<[1], [0], [0], [1], [0, 0, 1, 1], [], []>} : vector<64x4xbf16>, vector<4x4xbf16>, vector<64x4xf32> -> vector<64x4xf32>
    %65 = arith.addf %59, %64 : vector<64x4xf32>
    %c1_60 = arith.constant 1 : index
    %c1_61 = arith.constant 1 : index
    %c0_62 = arith.constant 0 : index
    %66 = vector.load %arg12[%c1_60, %c1_61, %c0_62] : memref<6x18x4xbf16, #tpu.memory_space<vmem>>, vector<4x16x4xbf16>
    %67 = vector.shape_cast %66 : vector<4x16x4xbf16> to vector<64x4xbf16>
    %c4 = arith.constant 4 : index
    %c0_63 = arith.constant 0 : index
    %c0_64 = arith.constant 0 : index
    %68 = vector.load %arg7[%c4, %c0_63, %c0_64] : memref<9x4x4xbf16, #tpu.memory_space<vmem>>, vector<1x4x4xbf16>
    %69 = vector.shape_cast %68 : vector<1x4x4xbf16> to vector<4x4xbf16>
    %cst_65 = arith.constant dense<0.000000e+00> : vector<64x4xf32>
    %70 = tpu.matmul %67, %69, %cst_65 {dimension_numbers = #tpu.dot_dimension_numbers<[1], [0], [0], [1], [0, 0, 1, 1], [], []>} : vector<64x4xbf16>, vector<4x4xbf16>, vector<64x4xf32> -> vector<64x4xf32>
    %71 = arith.addf %65, %70 : vector<64x4xf32>
    %c1_66 = arith.constant 1 : index
    %c2_67 = arith.constant 2 : index
    %c0_68 = arith.constant 0 : index
    %72 = vector.load %arg12[%c1_66, %c2_67, %c0_68] : memref<6x18x4xbf16, #tpu.memory_space<vmem>>, vector<4x16x4xbf16>
    %73 = vector.shape_cast %72 : vector<4x16x4xbf16> to vector<64x4xbf16>
    %c5_69 = arith.constant 5 : index
    %c0_70 = arith.constant 0 : index
    %c0_71 = arith.constant 0 : index
    %74 = vector.load %arg7[%c5_69, %c0_70, %c0_71] : memref<9x4x4xbf16, #tpu.memory_space<vmem>>, vector<1x4x4xbf16>
    %75 = vector.shape_cast %74 : vector<1x4x4xbf16> to vector<4x4xbf16>
    %cst_72 = arith.constant dense<0.000000e+00> : vector<64x4xf32>
    %76 = tpu.matmul %73, %75, %cst_72 {dimension_numbers = #tpu.dot_dimension_numbers<[1], [0], [0], [1], [0, 0, 1, 1], [], []>} : vector<64x4xbf16>, vector<4x4xbf16>, vector<64x4xf32> -> vector<64x4xf32>
    %77 = arith.addf %71, %76 : vector<64x4xf32>
    %c2_73 = arith.constant 2 : index
    %c0_74 = arith.constant 0 : index
    %c0_75 = arith.constant 0 : index
    %78 = vector.load %arg12[%c2_73, %c0_74, %c0_75] : memref<6x18x4xbf16, #tpu.memory_space<vmem>>, vector<4x16x4xbf16>
    %79 = vector.shape_cast %78 : vector<4x16x4xbf16> to vector<64x4xbf16>
    %c6 = arith.constant 6 : index
    %c0_76 = arith.constant 0 : index
    %c0_77 = arith.constant 0 : index
    %80 = vector.load %arg7[%c6, %c0_76, %c0_77] : memref<9x4x4xbf16, #tpu.memory_space<vmem>>, vector<1x4x4xbf16>
    %81 = vector.shape_cast %80 : vector<1x4x4xbf16> to vector<4x4xbf16>
    %cst_78 = arith.constant dense<0.000000e+00> : vector<64x4xf32>
    %82 = tpu.matmul %79, %81, %cst_78 {dimension_numbers = #tpu.dot_dimension_numbers<[1], [0], [0], [1], [0, 0, 1, 1], [], []>} : vector<64x4xbf16>, vector<4x4xbf16>, vector<64x4xf32> -> vector<64x4xf32>
    %83 = arith.addf %77, %82 : vector<64x4xf32>
    %c2_79 = arith.constant 2 : index
    %c1_80 = arith.constant 1 : index
    %c0_81 = arith.constant 0 : index
    %84 = vector.load %arg12[%c2_79, %c1_80, %c0_81] : memref<6x18x4xbf16, #tpu.memory_space<vmem>>, vector<4x16x4xbf16>
    %85 = vector.shape_cast %84 : vector<4x16x4xbf16> to vector<64x4xbf16>
    %c7 = arith.constant 7 : index
    %c0_82 = arith.constant 0 : index
    %c0_83 = arith.constant 0 : index
    %86 = vector.load %arg7[%c7, %c0_82, %c0_83] : memref<9x4x4xbf16, #tpu.memory_space<vmem>>, vector<1x4x4xbf16>
    %87 = vector.shape_cast %86 : vector<1x4x4xbf16> to vector<4x4xbf16>
    %cst_84 = arith.constant dense<0.000000e+00> : vector<64x4xf32>
    %88 = tpu.matmul %85, %87, %cst_84 {dimension_numbers = #tpu.dot_dimension_numbers<[1], [0], [0], [1], [0, 0, 1, 1], [], []>} : vector<64x4xbf16>, vector<4x4xbf16>, vector<64x4xf32> -> vector<64x4xf32>
    %89 = arith.addf %83, %88 : vector<64x4xf32>
    %c2_85 = arith.constant 2 : index
    %c2_86 = arith.constant 2 : index
    %c0_87 = arith.constant 0 : index
    %90 = vector.load %arg12[%c2_85, %c2_86, %c0_87] : memref<6x18x4xbf16, #tpu.memory_space<vmem>>, vector<4x16x4xbf16>
    %91 = vector.shape_cast %90 : vector<4x16x4xbf16> to vector<64x4xbf16>
    %c8 = arith.constant 8 : index
    %c0_88 = arith.constant 0 : index
    %c0_89 = arith.constant 0 : index
    %92 = vector.load %arg7[%c8, %c0_88, %c0_89] : memref<9x4x4xbf16, #tpu.memory_space<vmem>>, vector<1x4x4xbf16>
    %93 = vector.shape_cast %92 : vector<1x4x4xbf16> to vector<4x4xbf16>
    %cst_90 = arith.constant dense<0.000000e+00> : vector<64x4xf32>
    %94 = tpu.matmul %91, %93, %cst_90 {dimension_numbers = #tpu.dot_dimension_numbers<[1], [0], [0], [1], [0, 0, 1, 1], [], []>} : vector<64x4xbf16>, vector<4x4xbf16>, vector<64x4xf32> -> vector<64x4xf32>
    %95 = arith.addf %89, %94 : vector<64x4xf32>
    %c0_91 = arith.constant 0 : index
    %c0_92 = arith.constant 0 : index
    %96 = vector.load %arg8[%c0_91, %c0_92] : memref<1x4xf32, #tpu.memory_space<vmem>>, vector<1x4xf32>
    %97 = vector.broadcast %96 : vector<1x4xf32> to vector<64x4xf32>
    %98 = arith.addf %95, %97 : vector<64x4xf32>
    %cst_93 = arith.constant 0.000000e+00 : f32
    %99 = vector.broadcast %cst_93 : f32 to vector<64x4xf32>
    %100 = arith.maximumf %98, %99 : vector<64x4xf32>
    %101 = arith.truncf %100 : vector<64x4xf32> to vector<64x4xbf16>
    %c0_94 = arith.constant 0 : index
    %c0_95 = arith.constant 0 : index
    %102 = vector.load %arg9[%c0_94, %c0_95] : memref<4x8xbf16, #tpu.memory_space<vmem>>, vector<4x8xbf16>
    %cst_96 = arith.constant dense<0.000000e+00> : vector<64x8xf32>
    %103 = tpu.matmul %101, %102, %cst_96 {dimension_numbers = #tpu.dot_dimension_numbers<[1], [0], [0], [1], [0, 0, 1, 1], [], []>} : vector<64x4xbf16>, vector<4x8xbf16>, vector<64x8xf32> -> vector<64x8xf32>
    %c0_97 = arith.constant 0 : index
    %c0_98 = arith.constant 0 : index
    %104 = vector.load %arg10[%c0_97, %c0_98] : memref<1x8xf32, #tpu.memory_space<vmem>>, vector<1x8xf32>
    %105 = vector.broadcast %104 : vector<1x8xf32> to vector<64x8xf32>
    %106 = arith.addf %103, %105 : vector<64x8xf32>
    %107 = vector.shape_cast %3 : vector<4x16x8xbf16> to vector<64x8xbf16>
    %108 = arith.extf %107 : vector<64x8xbf16> to vector<64x8xf32>
    %109 = arith.addf %106, %108 : vector<64x8xf32>
    %cst_99 = arith.constant 0.000000e+00 : f32
    %110 = vector.broadcast %cst_99 : f32 to vector<64x8xf32>
    %111 = arith.maximumf %109, %110 : vector<64x8xf32>
    %112 = vector.shape_cast %111 : vector<64x8xf32> to vector<4x16x8xf32>
    %c0_100 = arith.constant 0 : index
    %c0_101 = arith.constant 0 : index
    %c0_102 = arith.constant 0 : index
    %c0_103 = arith.constant 0 : index
    %113 = vector.load %arg11[%c0_100, %c0_101, %c0_102, %c0_103] : memref<1x4x16x8xf32, #tpu.memory_space<vmem>>, vector<1x4x16x8xf32>
    %114 = vector.shape_cast %113 : vector<1x4x16x8xf32> to vector<4x16x8xf32>
    %115 = vector.shape_cast %112 : vector<4x16x8xf32> to vector<1x4x16x8xf32>
    tpu.vector_store %arg11[%c0_100, %c0_101, %c0_102, %c0_103], %115 {strides = array<i32>} : memref<1x4x16x8xf32, #tpu.memory_space<vmem>>, vector<1x4x16x8xf32>,
    return
  }
  func.func @transform_0(%arg0: i32, %arg1: i32) -> (i32, i32, i32, i32) {
    %c0_i32 = arith.constant 0 : i32
    %c0_i32_0 = arith.constant 0 : i32
    %c0_i32_1 = arith.constant 0 : i32
    return %arg0, %arg1, %c0_i32, %c0_i32_0 : i32, i32, i32, i32
  }
  func.func @transform_1(%arg0: i32, %arg1: i32) -> (i32, i32, i32, i32) {
    %c4_i32 = arith.constant 4 : i32
    %0 = arith.muli %arg1, %c4_i32 : i32
    %c1_i32 = arith.constant 1 : i32
    %1 = arith.subi %0, %c1_i32 : i32
    %c0_i32 = arith.constant 0 : i32
    %2 = arith.maxsi %1, %c0_i32 : i32
    %c0_i32_0 = arith.constant 0 : i32
    %c0_i32_1 = arith.constant 0 : i32
    %c0_i32_2 = arith.constant 0 : i32
    return %arg0, %2, %c0_i32_0, %c0_i32_1 : i32, i32, i32, i32
  }
  func.func @transform_2(%arg0: i32, %arg1: i32) -> (i32, i32, i32, i32) {
    %c4_i32 = arith.constant 4 : i32
    %0 = arith.muli %arg1, %c4_i32 : i32
    %c4_i32_0 = arith.constant 4 : i32
    %1 = arith.addi %0, %c4_i32_0 : i32
    %c15_i32 = arith.constant 15 : i32
    %2 = arith.minsi %1, %c15_i32 : i32
    %c0_i32 = arith.constant 0 : i32
    %c0_i32_1 = arith.constant 0 : i32
    %c0_i32_2 = arith.constant 0 : i32
    return %arg0, %2, %c0_i32, %c0_i32_1 : i32, i32, i32, i32
  }
  func.func @transform_3(%arg0: i32, %arg1: i32) -> (i32, i32) {
    %c0_i32 = arith.constant 0 : i32
    %c0_i32_0 = arith.constant 0 : i32
    %c0_i32_1 = arith.constant 0 : i32
    return %c0_i32, %c0_i32_0 : i32, i32
  }
  func.func @transform_4(%arg0: i32, %arg1: i32) -> (i32, i32) {
    %c0_i32 = arith.constant 0 : i32
    %c0_i32_0 = arith.constant 0 : i32
    %c0_i32_1 = arith.constant 0 : i32
    return %c0_i32, %c0_i32_0 : i32, i32
  }
  func.func @transform_5(%arg0: i32, %arg1: i32) -> (i32, i32, i32) {
    %c0_i32 = arith.constant 0 : i32
    %c0_i32_0 = arith.constant 0 : i32
    %c0_i32_1 = arith.constant 0 : i32
    %c0_i32_2 = arith.constant 0 : i32
    return %c0_i32, %c0_i32_0, %c0_i32_1 : i32, i32, i32
  }
  func.func @transform_6(%arg0: i32, %arg1: i32) -> (i32, i32) {
    %c0_i32 = arith.constant 0 : i32
    %c0_i32_0 = arith.constant 0 : i32
    %c0_i32_1 = arith.constant 0 : i32
    return %c0_i32, %c0_i32_0 : i32, i32
  }
  func.func @transform_7(%arg0: i32, %arg1: i32) -> (i32, i32) {
    %c0_i32 = arith.constant 0 : i32
    %c0_i32_0 = arith.constant 0 : i32
    %c0_i32_1 = arith.constant 0 : i32
    return %c0_i32, %c0_i32_0 : i32, i32
  }
  func.func @transform_8(%arg0: i32, %arg1: i32) -> (i32, i32) {
    %c0_i32 = arith.constant 0 : i32
    %c0_i32_0 = arith.constant 0 : i32
    %c0_i32_1 = arith.constant 0 : i32
    return %c0_i32, %c0_i32_0 : i32, i32
  }
  func.func @transform_9(%arg0: i32, %arg1: i32) -> (i32, i32, i32, i32) {
    %c0_i32 = arith.constant 0 : i32
    %c0_i32_0 = arith.constant 0 : i32
    %c0_i32_1 = arith.constant 0 : i32
    return %arg0, %arg1, %c0_i32, %c0_i32_0 : i32, i32, i32, i32
  }
}

</mosaic_0001>

<llo_original>
// kernel: tpu_custom_call.1
$region0: #{tpu_custom_call.1}
  #allocation0 [shape = 'u32[]', space=smem, size = 0x4, offset = 0x4, fixed_abs, tag = 'smem constant byte address 0x4 - core index']
  #allocation1 [shape = 'u32[144,128]{1,0:T(1,128)}', space=vmem, size = 0x12000, scoped, tag = 'internal scratch']
  #allocation2 [shape = 'bf16[6,18,4]{2,1,0:T(8,128)(2,1)}', space=vmem, size = 0x9000, scoped, tag = 'scratch operand']
  %s0 = inlined_call_operand.vmem [shape: bf16[2,16,16,8], index: 0, kind: input, shape index: {}]
  %s1 = inlined_call_operand.vmem [shape: bf16[2,16,16,8], index: 1, kind: input, shape index: {}]
  %s2 = inlined_call_operand.vmem [shape: bf16[2,16,16,8], index: 2, kind: input, shape index: {}]
  %s3 = inlined_call_operand.vmem [shape: bf16[8,4], index: 3, kind: input, shape index: {}]
  %s4 = inlined_call_operand.vmem [shape: f32[1,4], index: 4, kind: input, shape index: {}]
  %s5 = inlined_call_operand.vmem [shape: bf16[9,4,4], index: 5, kind: input, shape index: {}]
  %s6 = inlined_call_operand.vmem [shape: f32[1,4], index: 6, kind: input, shape index: {}]
  %s7 = inlined_call_operand.vmem [shape: bf16[4,8], index: 7, kind: input, shape index: {}]
  %s8 = inlined_call_operand.vmem [shape: f32[1,8], index: 8, kind: input, shape index: {}]
  %s9 = inlined_call_operand.vmem [shape: f32[2,16,16,8], index: 9, kind: output, shape index: {}]
  %s10 = sld [smem:[#allocation0]]
  $region69: #{tpu_custom_call.1} parent=0
    _
  %s12 = ssub.s32 1, %s10
  %s13 = scalar_select 0, %s12, %s10
  loop: start=0, step=1, limit=10
  $region2: #{tpu_custom_call.1} parent=0 // loop_pre_header
    _
  $region3: #{tpu_custom_call.1} parent=0 // loop_header
    %s15 = sphi 0, %s19
    %p16 = scmp.ge.s32.totalorder %s15, 10
    %s22 = sphi 0, %s34
    %s23 = sphi 0, %s30
    %s24 = sphi 0, %s22
    %s25 = sphi 0, %s23
    %s26 = sphi 0, %s24
    %s27 = sphi 0, %s25
    %s39 = sphi 0, %s41
    %s42 = sphi 0, %s39
    %s43 = sphi 0, %s42
    %s59 = sphi 0, %s43
    %s75 = sphi 0, %s77
    %s78 = sphi 0, %s75
    %s79 = sphi 0, %s78
    %s95 = sphi 0, %s79
    %s111 = sphi 0, %s113
    %s114 = sphi 0, %s111
    %s115 = sphi 0, %s114
    %s131 = sphi 0, %s115
    %s135 = sphi 0, %s135
    %s137 = sphi 0, %s135
    %s138 = sphi 0, %s137
    %s152 = sphi 0, %s138
    %s156 = sphi 0, %s156
    %s158 = sphi 0, %s156
    %s159 = sphi 0, %s158
    %s173 = sphi 0, %s159
    %s177 = sphi 0, %s177
    %s179 = sphi 0, %s177
    %s180 = sphi 0, %s179
    %s194 = sphi 0, %s180
    %s198 = sphi 0, %s198
    %s200 = sphi 0, %s198
    %s201 = sphi 0, %s200
    %s215 = sphi 0, %s201
    %s219 = sphi 0, %s219
    %s221 = sphi 0, %s219
    %s222 = sphi 0, %s221
    %s236 = sphi 0, %s222
    %s240 = sphi 0, %s240
    %s242 = sphi 0, %s240
    %s243 = sphi 0, %s242
    %s257 = sphi 0, %s243
    %s265 = sphi 0, %s267
    %s268 = sphi 0, %s265
    %s269 = sphi 0, %s268
    %s285 = sphi 0, %s269
  $region4: #{tpu_custom_call.1} parent=0 // loop_header_branch
    %18 = sbr.rel (%p16) target = $region8
  $region5: #{tpu_custom_call.1} parent=0 // loop_body
    %s20 = ssub.s32 %s15, 1
    %s21 = ssub.s32 %s15, 2
    %s28 = sadd.s32 1, %s23
    %p29 = scmp.ge.s32.totalorder %s28, 4
    %s30 = scalar_select %p29, 0, %s28
    %s31 = sadd.s32 1, %s22
    %s32 = scalar_select %p29, %s31, %s22
    %p33 = scmp.ge.s32.totalorder %s32, 2
    %s34 = scalar_select %p33, 0, %s32
    %s35 = ssub.s32 %s22, %s34
    %s36 = ssub.s32 %s23, %s30
    %s37 = sor.u32 %s35, %s36
    %p38 = scmp.eq.s32.totalorder %s37, 0
    %s40 = sadd.s32 %s39, 1
    %s41 = scalar_select %p38, %s39, %s40
    %p44 = pneg %p38
    %p45 = scmp.eq.s32.totalorder %s15, 7
    %p46 = por %p44, %p45
    %p47 = scmp.ne.s32.totalorder %s39, %s42
    %p48 = scmp.eq.s32.totalorder %s15, 0
    %p49 = por %p47, %p48
    %p50 = scmp.ne.s32.totalorder %s39, %s42
    %p51 = scmp.eq.s32.totalorder %s20, 7
    %p52 = por %p50, %p51
    %p53 = scmp.ne.s32.totalorder %s42, %s43
    %p54 = scmp.eq.s32.totalorder %s20, 0
    %p55 = por %p53, %p54
    %p56 = scmp.ne.s32.totalorder %s42, %s43
    %p57 = scmp.eq.s32.totalorder %s21, 7
    %p58 = por %p56, %p57
    %p60 = scmp.ne.s32.totalorder %s43, %s59
    %p61 = scmp.eq.s32.totalorder %s21, 0
    %p62 = por %p60, %p61
    %s63 = smul.u32 %s23, 4
    %s64 = ssub.s32 %s63, 1
    %p65 = scmp.gt.s32.totalorder %s64, 0
    %s66 = scalar_select %p65, %s64, 0
    %s67 = smul.u32 %s30, 4
    %s68 = ssub.s32 %s67, 1
    %p69 = scmp.gt.s32.totalorder %s68, 0
    %s70 = scalar_select %p69, %s68, 0
    %s71 = ssub.s32 %s22, %s34
    %s72 = ssub.s32 %s66, %s70
    %s73 = sor.u32 %s71, %s72
    %p74 = scmp.eq.s32.totalorder %s73, 0
    %s76 = sadd.s32 %s75, 1
    %s77 = scalar_select %p74, %s75, %s76
    %p80 = pneg %p74
    %p81 = scmp.eq.s32.totalorder %s15, 7
    %p82 = por %p80, %p81
    %p83 = scmp.ne.s32.totalorder %s75, %s78
    %p84 = scmp.eq.s32.totalorder %s15, 0
    %p85 = por %p83, %p84
    %p86 = scmp.ne.s32.totalorder %s75, %s78
    %p87 = scmp.eq.s32.totalorder %s20, 7
    %p88 = por %p86, %p87
    %p89 = scmp.ne.s32.totalorder %s78, %s79
    %p90 = scmp.eq.s32.totalorder %s20, 0
    %p91 = por %p89, %p90
    %p92 = scmp.ne.s32.totalorder %s78, %s79
    %p93 = scmp.eq.s32.totalorder %s21, 7
    %p94 = por %p92, %p93
    %p96 = scmp.ne.s32.totalorder %s79, %s95
    %p97 = scmp.eq.s32.totalorder %s21, 0
    %p98 = por %p96, %p97
    %s99 = smul.u32 %s23, 4
    %s100 = sadd.s32 %s99, 4
    %p101 = scmp.lt.s32.totalorder %s100, 15
    %s102 = scalar_select %p101, %s100, 15
    %s103 = smul.u32 %s30, 4
    %s104 = sadd.s32 %s103, 4
    %p105 = scmp.lt.s32.totalorder %s104, 15
    %s106 = scalar_select %p105, %s104, 15
    %s107 = ssub.s32 %s22, %s34
    %s108 = ssub.s32 %s102, %s106
    %s109 = sor.u32 %s107, %s108
    %p110 = scmp.eq.s32.totalorder %s109, 0
    %s112 = sadd.s32 %s111, 1
    %s113 = scalar_select %p110, %s111, %s112
    %p116 = pneg %p110
    %p117 = scmp.eq.s32.totalorder %s15, 7
    %p118 = por %p116, %p117
    %p119 = scmp.ne.s32.totalorder %s111, %s114
    %p120 = scmp.eq.s32.totalorder %s15, 0
    %p121 = por %p119, %p120
    %p122 = scmp.ne.s32.totalorder %s111, %s114
    %p123 = scmp.eq.s32.totalorder %s20, 7
    %p124 = por %p122, %p123
    %p125 = scmp.ne.s32.totalorder %s114, %s115
    %p126 = scmp.eq.s32.totalorder %s20, 0
    %p127 = por %p125, %p126
    %p128 = scmp.ne.s32.totalorder %s114, %s115
    %p129 = scmp.eq.s32.totalorder %s21, 7
    %p130 = por %p128, %p129
    %p132 = scmp.ne.s32.totalorder %s115, %s131
    %p133 = scmp.eq.s32.totalorder %s21, 0
    %p134 = por %p132, %p133
    %s136 = sadd.s32 %s135, 1
    %p139 = scmp.eq.s32.totalorder %s15, 7
    %p140 = scmp.ne.s32.totalorder %s135, %s137
    %p141 = scmp.eq.s32.totalorder %s15, 0
    %p142 = por %p140, %p141
    %p143 = scmp.ne.s32.totalorder %s135, %s137
    %p144 = scmp.eq.s32.totalorder %s20, 7
    %p145 = por %p143, %p144
    %p146 = scmp.ne.s32.totalorder %s137, %s138
    %p147 = scmp.eq.s32.totalorder %s20, 0
    %p148 = por %p146, %p147
    %p149 = scmp.ne.s32.totalorder %s137, %s138
    %p150 = scmp.eq.s32.totalorder %s21, 7
    %p151 = por %p149, %p150
    %p153 = scmp.ne.s32.totalorder %s138, %s152
    %p154 = scmp.eq.s32.totalorder %s21, 0
    %p155 = por %p153, %p154
    %s157 = sadd.s32 %s156, 1
    %p160 = scmp.eq.s32.totalorder %s15, 7
    %p161 = scmp.ne.s32.totalorder %s156, %s158
    %p162 = scmp.eq.s32.totalorder %s15, 0
    %p163 = por %p161, %p162
    %p164 = scmp.ne.s32.totalorder %s156, %s158
    %p165 = scmp.eq.s32.totalorder %s20, 7
    %p166 = por %p164, %p165
    %p167 = scmp.ne.s32.totalorder %s158, %s159
    %p168 = scmp.eq.s32.totalorder %s20, 0
    %p169 = por %p167, %p168
    %p170 = scmp.ne.s32.totalorder %s158, %s159
    %p171 = scmp.eq.s32.totalorder %s21, 7
    %p172 = por %p170, %p171
    %p174 = scmp.ne.s32.totalorder %s159, %s173
    %p175 = scmp.eq.s32.totalorder %s21, 0
    %p176 = por %p174, %p175
    %s178 = sadd.s32 %s177, 1
    %p181 = scmp.eq.s32.totalorder %s15, 7
    %p182 = scmp.ne.s32.totalorder %s177, %s179
    %p183 = scmp.eq.s32.totalorder %s15, 0
    %p184 = por %p182, %p183
    %p185 = scmp.ne.s32.totalorder %s177, %s179
    %p186 = scmp.eq.s32.totalorder %s20, 7
    %p187 = por %p185, %p186
    %p188 = scmp.ne.s32.totalorder %s179, %s180
    %p189 = scmp.eq.s32.totalorder %s20, 0
    %p190 = por %p188, %p189
    %p191 = scmp.ne.s32.totalorder %s179, %s180
    %p192 = scmp.eq.s32.totalorder %s21, 7
    %p193 = por %p191, %p192
    %p195 = scmp.ne.s32.totalorder %s180, %s194
    %p196 = scmp.eq.s32.totalorder %s21, 0
    %p197 = por %p195, %p196
    %s199 = sadd.s32 %s198, 1
    %p202 = scmp.eq.s32.totalorder %s15, 7
    %p203 = scmp.ne.s32.totalorder %s198, %s200
    %p204 = scmp.eq.s32.totalorder %s15, 0
    %p205 = por %p203, %p204
    %p206 = scmp.ne.s32.totalorder %s198, %s200
    %p207 = scmp.eq.s32.totalorder %s20, 7
    %p208 = por %p206, %p207
    %p209 = scmp.ne.s32.totalorder %s200, %s201
    %p210 = scmp.eq.s32.totalorder %s20, 0
    %p211 = por %p209, %p210
    %p212 = scmp.ne.s32.totalorder %s200, %s201
    %p213 = scmp.eq.s32.totalorder %s21, 7
    %p214 = por %p212, %p213
    %p216 = scmp.ne.s32.totalorder %s201, %s215
    %p217 = scmp.eq.s32.totalorder %s21, 0
    %p218 = por %p216, %p217
    %s220 = sadd.s32 %s219, 1
    %p223 = scmp.eq.s32.totalorder %s15, 7
    %p224 = scmp.ne.s32.totalorder %s219, %s221
    %p225 = scmp.eq.s32.totalorder %s15, 0
    %p226 = por %p224, %p225
    %p227 = scmp.ne.s32.totalorder %s219, %s221
    %p228 = scmp.eq.s32.totalorder %s20, 7
    %p229 = por %p227, %p228
    %p230 = scmp.ne.s32.totalorder %s221, %s222
    %p231 = scmp.eq.s32.totalorder %s20, 0
    %p232 = por %p230, %p231
    %p233 = scmp.ne.s32.totalorder %s221, %s222
    %p234 = scmp.eq.s32.totalorder %s21, 7
    %p235 = por %p233, %p234
    %p237 = scmp.ne.s32.totalorder %s222, %s236
    %p238 = scmp.eq.s32.totalorder %s21, 0
    %p239 = por %p237, %p238
    %s241 = sadd.s32 %s240, 1
    %p244 = scmp.eq.s32.totalorder %s15, 7
    %p245 = scmp.ne.s32.totalorder %s240, %s242
    %p246 = scmp.eq.s32.totalorder %s15, 0
    %p247 = por %p245, %p246
    %p248 = scmp.ne.s32.totalorder %s240, %s242
    %p249 = scmp.eq.s32.totalorder %s20, 7
    %p250 = por %p248, %p249
    %p251 = scmp.ne.s32.totalorder %s242, %s243
    %p252 = scmp.eq.s32.totalorder %s20, 0
    %p253 = por %p251, %p252
    %p254 = scmp.ne.s32.totalorder %s242, %s243
    %p255 = scmp.eq.s32.totalorder %s21, 7
    %p256 = por %p254, %p255
    %p258 = scmp.ne.s32.totalorder %s243, %s257
    %p259 = scmp.eq.s32.totalorder %s21, 0
    %p260 = por %p258, %p259
    %s261 = ssub.s32 %s22, %s34
    %s262 = ssub.s32 %s23, %s30
    %s263 = sor.u32 %s261, %s262
    %p264 = scmp.eq.s32.totalorder %s263, 0
    %s266 = sadd.s32 %s265, 1
    %s267 = scalar_select %p264, %s265, %s266
    %p270 = pneg %p264
    %p271 = scmp.eq.s32.totalorder %s15, 7
    %p272 = por %p270, %p271
    %p273 = scmp.ne.s32.totalorder %s265, %s268
    %p274 = scmp.eq.s32.totalorder %s15, 0
    %p275 = por %p273, %p274
    %p276 = scmp.ne.s32.totalorder %s265, %s268
    %p277 = scmp.eq.s32.totalorder %s20, 7
    %p278 = por %p276, %p277
    %p279 = scmp.ne.s32.totalorder %s268, %s269
    %p280 = scmp.eq.s32.totalorder %s20, 0
    %p281 = por %p279, %p280
    %p282 = scmp.ne.s32.totalorder %s268, %s269
    %p283 = scmp.eq.s32.totalorder %s21, 7
    %p284 = por %p282, %p283
    %p286 = scmp.ne.s32.totalorder %s269, %s285
    %p287 = scmp.eq.s32.totalorder %s21, 0
    %p288 = por %p286, %p287
    %p289 = scmp.le.s32.totalorder 1, %s15
    %p290 = scmp.lt.s32.totalorder %s15, 9
    %p291 = pnand %p289, %p290
    %p292 = pneg %p291
    // Predicated region
    $region9: #{tpu_custom_call.1} parent=5 // pred_check
      _
    $region10: #{tpu_custom_call.1} parent=5 // pred_check_branch
      %294 = sbr.rel (%p291) target = $region12
    $region11: #{tpu_custom_call.1} parent=5 // pred_region
      %s295 = ssub.s32 %s15, 1
      // Predicated region
      $region13: #{tpu_custom_call.1} parent=11 // pred_check
        %p296 = pneg %p148
      $region14: #{tpu_custom_call.1} parent=11 // pred_check_branch
        %298 = sbr.rel (%p296) target = $region16
      $region15: #{tpu_custom_call.1} parent=11 // pred_region
        _
      $region16: #{tpu_custom_call.1} parent=11 // pred_fallthru
        _
      // Predicated region
      $region17: #{tpu_custom_call.1} parent=11 // pred_check
        %p299 = pneg %p169
      $region18: #{tpu_custom_call.1} parent=11 // pred_check_branch
        %301 = sbr.rel (%p299) target = $region20
      $region19: #{tpu_custom_call.1} parent=11 // pred_region
        _
      $region20: #{tpu_custom_call.1} parent=11 // pred_fallthru
        _
      // Predicated region
      $region21: #{tpu_custom_call.1} parent=11 // pred_check
        %p302 = pneg %p190
      $region22: #{tpu_custom_call.1} parent=11 // pred_check_branch
        %304 = sbr.rel (%p302) target = $region24
      $region23: #{tpu_custom_call.1} parent=11 // pred_region
        _
      $region24: #{tpu_custom_call.1} parent=11 // pred_fallthru
        _
      // Predicated region
      $region25: #{tpu_custom_call.1} parent=11 // pred_check
        %p305 = pneg %p211
      $region26: #{tpu_custom_call.1} parent=11 // pred_check_branch
        %307 = sbr.rel (%p305) target = $region28
      $region27: #{tpu_custom_call.1} parent=11 // pred_region
        _
      $region28: #{tpu_custom_call.1} parent=11 // pred_fallthru
        _
      // Predicated region
      $region29: #{tpu_custom_call.1} parent=11 // pred_check
        %p308 = pneg %p232
      $region30: #{tpu_custom_call.1} parent=11 // pred_check_branch
        %310 = sbr.rel (%p308) target = $region32
      $region31: #{tpu_custom_call.1} parent=11 // pred_region
        _
      $region32: #{tpu_custom_call.1} parent=11 // pred_fallthru
        _
      // Predicated region
      $region33: #{tpu_custom_call.1} parent=11 // pred_check
        %p311 = pneg %p253
      $region34: #{tpu_custom_call.1} parent=11 // pred_check_branch
        %313 = sbr.rel (%p311) target = $region36
      $region35: #{tpu_custom_call.1} parent=11 // pred_region
        _
      $region36: #{tpu_custom_call.1} parent=11 // pred_fallthru
        _
    $region12: #{tpu_custom_call.1} parent=5 // pred_fallthru
      _
    %p314 = scmp.lt.s32.totalorder %s15, 8
    // Predicated region
    $region37: #{tpu_custom_call.1} parent=5 // pred_check
      %p315 = pneg %p314
    $region38: #{tpu_custom_call.1} parent=5 // pred_check_branch
      %317 = sbr.rel (%p315) target = $region40
    $region39: #{tpu_custom_call.1} parent=5 // pred_region
      // Predicated region
      $region41: #{tpu_custom_call.1} parent=39 // pred_check
        %p318 = pneg %p49
      $region42: #{tpu_custom_call.1} parent=39 // pred_check_branch
        %320 = sbr.rel (%p318) target = $region44
      $region43: #{tpu_custom_call.1} parent=39 // pred_region
        %s321 = smul.u32 4, %s23
        %p322 = scmp.lt.s32.totalorder %s22, 1
        %s323 = scalar_select %p322, %s22, 1
        %p324 = scmp.lt.s32.totalorder %s321, 15
        %s325 = scalar_select %p324, %s321, 15
        %s326 = smul.addr %s325, 2
        %s327 = smul.addr %s323, 32
        %s328 = sadd.s32 %s326, %s327
        %s329 = smul.addr %s328, 4
        %s330 = scalar_lea.vmem %s0, %s329
        %s331 = smul.u32 4, %s23
      $region44: #{tpu_custom_call.1} parent=39 // pred_fallthru
        _
      // Predicated region
      $region45: #{tpu_custom_call.1} parent=39 // pred_check
        %p332 = pneg %p85
      $region46: #{tpu_custom_call.1} parent=39 // pred_check_branch
        %334 = sbr.rel (%p332) target = $region48
      $region47: #{tpu_custom_call.1} parent=39 // pred_region
        %s335 = smul.u32 %s23, 4
        %s336 = ssub.s32 %s335, 1
        %p337 = scmp.gt.s32.totalorder %s336, 0
        %s338 = scalar_select %p337, %s336, 0
        %p339 = scmp.lt.s32.totalorder %s22, 1
        %s340 = scalar_select %p339, %s22, 1
        %p341 = scmp.lt.s32.totalorder %s338, 15
        %s342 = scalar_select %p341, %s338, 15
        %s343 = smul.addr %s342, 2
        %s344 = smul.addr %s340, 32
        %s345 = sadd.s32 %s343, %s344
        %s346 = smul.addr %s345, 4
        %s347 = scalar_lea.vmem %s1, %s346
        %s348 = smul.u32 %s23, 4
        %s349 = ssub.s32 %s348, 1
        %p350 = scmp.gt.s32.totalorder %s349, 0
        %s351 = scalar_select %p350, %s349, 0
      $region48: #{tpu_custom_call.1} parent=39 // pred_fallthru
        _
      // Predicated region
      $region49: #{tpu_custom_call.1} parent=39 // pred_check
        %p352 = pneg %p121
      $region50: #{tpu_custom_call.1} parent=39 // pred_check_branch
        %354 = sbr.rel (%p352) target = $region52
      $region51: #{tpu_custom_call.1} parent=39 // pred_region
        %s355 = smul.u32 %s23, 4
        %s356 = sadd.s32 %s355, 4
        %p357 = scmp.lt.s32.totalorder %s356, 15
        %s358 = scalar_select %p357, %s356, 15
        %p359 = scmp.lt.s32.totalorder %s22, 1
        %s360 = scalar_select %p359, %s22, 1
        %p361 = scmp.lt.s32.totalorder %s358, 15
        %s362 = scalar_select %p361, %s358, 15
        %s363 = smul.addr %s362, 2
        %s364 = smul.addr %s360, 32
        %s365 = sadd.s32 %s363, %s364
        %s366 = smul.addr %s365, 4
        %s367 = scalar_lea.vmem %s2, %s366
        %s368 = smul.u32 %s23, 4
        %s369 = sadd.s32 %s368, 4
        %p370 = scmp.lt.s32.totalorder %s369, 15
        %s371 = scalar_select %p370, %s369, 15
      $region52: #{tpu_custom_call.1} parent=39 // pred_fallthru
        _
    $region40: #{tpu_custom_call.1} parent=5 // pred_fallthru
      _
    %p372 = scmp.le.s32.totalorder 1, %s15
    %p373 = scmp.lt.s32.totalorder %s15, 9
    %p374 = pnand %p372, %p373
    %p375 = pneg %p374
    // Predicated region
    $region53: #{tpu_custom_call.1} parent=5 // pred_check
      _
    $region54: #{tpu_custom_call.1} parent=5 // pred_check_branch
      %377 = sbr.rel (%p374) target = $region56
    $region55: #{tpu_custom_call.1} parent=5 // pred_region
      %s378 = ssub.s32 %s15, 1
      %s379 = smul.u32 4, %s25
      %p380 = scmp.lt.s32.totalorder %s24, 1
      %s381 = scalar_select %p380, %s24, 1
      %p382 = scmp.lt.s32.totalorder %s379, 15
      %s383 = scalar_select %p382, %s379, 15
      %s384 = smul.addr %s383, 2
      %s385 = smul.addr %s381, 32
      %s386 = sadd.s32 %s384, %s385
      %s387 = smul.addr %s386, 4
      %s388 = scalar_lea.vmem %s0, %s387
      %p389 = pneg %p55
      %p390 = pneg %p52
      %s391 = smul.u32 %s25, 4
      %s392 = ssub.s32 %s391, 1
      %p393 = scmp.gt.s32.totalorder %s392, 0
      %s394 = scalar_select %p393, %s392, 0
      %p395 = scmp.lt.s32.totalorder %s24, 1
      %s396 = scalar_select %p395, %s24, 1
      %p397 = scmp.lt.s32.totalorder %s394, 15
      %s398 = scalar_select %p397, %s394, 15
      %s399 = smul.addr %s398, 2
      %s400 = smul.addr %s396, 32
      %s401 = sadd.s32 %s399, %s400
      %s402 = smul.addr %s401, 4
      %s403 = scalar_lea.vmem %s1, %s402
      %p404 = pneg %p91
      %p405 = pneg %p88
      %s406 = smul.u32 %s25, 4
      %s407 = sadd.s32 %s406, 4
      %p408 = scmp.lt.s32.totalorder %s407, 15
      %s409 = scalar_select %p408, %s407, 15
      %p410 = scmp.lt.s32.totalorder %s24, 1
      %s411 = scalar_select %p410, %s24, 1
      %p412 = scmp.lt.s32.totalorder %s409, 15
      %s413 = scalar_select %p412, %s409, 15
      %s414 = smul.addr %s413, 2
      %s415 = smul.addr %s411, 32
      %s416 = sadd.s32 %s414, %s415
      %s417 = smul.addr %s416, 4
      %s418 = scalar_lea.vmem %s2, %s417
      %p419 = pneg %p127
      %p420 = pneg %p124
      %p421 = pneg %p148
      %p422 = pneg %p145
      %p423 = pneg %p169
      %p424 = pneg %p166
      %p425 = pneg %p190
      %p426 = pneg %p187
      %p427 = pneg %p211
      %p428 = pneg %p208
      %p429 = pneg %p232
      %p430 = pneg %p229
      %p431 = pneg %p253
      %p432 = pneg %p250
      %p433 = pneg %p281
      %p434 = pneg %p278
      %s435 = smul.u32 4, %s25
      %p436 = scmp.lt.s32.totalorder %s24, 1
      %s437 = scalar_select %p436, %s24, 1
      %p438 = scmp.lt.s32.totalorder %s435, 15
      %s439 = scalar_select %p438, %s435, 15
      %s440 = smul.addr %s439, 2
      %s441 = smul.addr %s437, 32
      %s442 = sadd.s32 %s440, %s441
      %s443 = smul.addr %s442, 8
      %s444 = scalar_lea.vmem %s9, %s443
      %s445 = smul.u32 4, %s25
      %p446 = scmp.lt.s32.totalorder %s24, 1
      %s447 = scalar_select %p446, %s24, 1
      %p448 = scmp.lt.s32.totalorder %s445, 15
      %s449 = scalar_select %p448, %s445, 15
      %s450 = smul.addr %s449, 2
      %s451 = smul.addr %s447, 32
      %s452 = sadd.s32 %s450, %s451
      %s453 = smul.addr %s452, 4
      %s454 = scalar_lea.vmem %s0, %s453
      %s455 = smul.u32 4, %s25
      %s456 = smul.u32 %s25, 4
      %s457 = ssub.s32 %s456, 1
      %p458 = scmp.gt.s32.totalorder %s457, 0
      %s459 = scalar_select %p458, %s457, 0
      %p460 = scmp.lt.s32.totalorder %s24, 1
      %s461 = scalar_select %p460, %s24, 1
      %p462 = scmp.lt.s32.totalorder %s459, 15
      %s463 = scalar_select %p462, %s459, 15
      %s464 = smul.addr %s463, 2
      %s465 = smul.addr %s461, 32
      %s466 = sadd.s32 %s464, %s465
      %s467 = smul.addr %s466, 4
      %s468 = scalar_lea.vmem %s1, %s467
      %s469 = smul.u32 %s25, 4
      %s470 = ssub.s32 %s469, 1
      %p471 = scmp.gt.s32.totalorder %s470, 0
      %s472 = scalar_select %p471, %s470, 0
      %s473 = smul.u32 %s25, 4
      %s474 = sadd.s32 %s473, 4
      %p475 = scmp.lt.s32.totalorder %s474, 15
      %s476 = scalar_select %p475, %s474, 15
      %p477 = scmp.lt.s32.totalorder %s24, 1
      %s478 = scalar_select %p477, %s24, 1
      %p479 = scmp.lt.s32.totalorder %s476, 15
      %s480 = scalar_select %p479, %s476, 15
      %s481 = smul.addr %s480, 2
      %s482 = smul.addr %s478, 32
      %s483 = sadd.s32 %s481, %s482
      %s484 = smul.addr %s483, 4
      %s485 = scalar_lea.vmem %s2, %s484
      %s486 = smul.u32 %s25, 4
      %s487 = sadd.s32 %s486, 4
      %p488 = scmp.lt.s32.totalorder %s487, 15
      %s489 = scalar_select %p488, %s487, 15
      %s490 = smul.u32 4, %s25
      %p491 = scmp.lt.s32.totalorder %s24, 1
      %s492 = scalar_select %p491, %s24, 1
      %p493 = scmp.lt.s32.totalorder %s490, 15
      %s494 = scalar_select %p493, %s490, 15
      %s495 = smul.addr %s494, 2
      %s496 = smul.addr %s492, 32
      %s497 = sadd.s32 %s495, %s496
      %s498 = smul.addr %s497, 8
      %s499 = scalar_lea.vmem %s9, %s498
      %s500 = smul.u32 4, %s25
      %v502 = vld [vmem:[%s3] sm:$0xf]
      %v503 = vld [vmem:[%s4] sm:$0x1]
      %v504 = vld [vmem:[%s454] sm:$0xf]
      %v505 = vld [vmem:[%s454 + $0x4] sm:$0xf]
      %v506 = vld [vmem:[%s454 + $0x8] sm:$0xf]
      %v507 = vld [vmem:[%s454 + $0xc] sm:$0xf]
      %v508 = vld [vmem:[%s454 + $0x10] sm:$0xf]
      %v509 = vld [vmem:[%s454 + $0x14] sm:$0xf]
      %v510 = vld [vmem:[%s454 + $0x18] sm:$0xf]
      %v511 = vld [vmem:[%s454 + $0x1c] sm:$0xf]
      %v513 = vlaneseq
      %v514 = vshrl.u32 %v513, 7
      %v515 = vsub.s32 0, %v514
      %v516 = vrot.slane %v503, %v515
      %v526 = vunpack.c.l.b16 %v504
      %v527 = vunpack.c.l.b16 %v505
      %v528 = vunpack.c.l.b16 %v506
      %v529 = vunpack.c.l.b16 %v507
      %v530 = vunpack.c.l.b16 %v508
      %v531 = vunpack.c.l.b16 %v509
      %v532 = vunpack.c.l.b16 %v510
      %v533 = vunpack.c.l.b16 %v511
      %v534 = vpack.c.b16 %v527, %v526
      %v535 = vpack.c.b16 %v529, %v528
      %v536 = vpack.c.b16 %v531, %v530
      %v537 = vpack.c.b16 %v533, %v532
      %vm538 = vcmask 64512
      %v540 = vsel %vm538, %v534, 0
      %v543 = vsel %vm538, %v535, 0
      %v546 = vsel %vm538, %v536, 0
      %v549 = vsel %vm538, %v537, 0
      %vm551 = vcmask 1043456
      %v553 = vsel %vm551, %v502, 0
      %555 = vmatprep.subr.bf16.mxu0 0
      %556 = vmatpush1.bf16.msra.mxu0 0
      %557 = vmatprep.subr.bf16.mxu0 0
      %558 = vmatpush1.bf16.msra.mxu0 0
      %559 = vmatprep.subr.bf16.mxu0 0
      %560 = vmatpush1.bf16.msra.mxu0 0
      %561 = vmatprep.subr.bf16.mxu0 0
      %562 = vmatpush1.bf16.msra.mxu0 0
      %563 = vmatprep.subr.bf16.mxu0 0
      %564 = vmatpush1.bf16.msra.mxu0 0
      %565 = vmatprep.subr.bf16.mxu0 0
      %566 = vmatpush1.bf16.msra.mxu0 0
      %567 = vmatprep.subr.bf16.mxu0 0
      %568 = vmatpush1.bf16.msra.mxu0 0
      %569 = vmatprep.subr.bf16.mxu0 0
      %570 = vmatpush1.bf16.msra.mxu0 %v553
      %571 = vmatprep.subr.bf16.mxu0 0
      %572 = vmatpush2.bf16.msra.mxu0 0
      %573 = vmatprep.subr.bf16.mxu0 0
      %574 = vmatpush2.bf16.msra.mxu0 0
      %575 = vmatprep.subr.bf16.mxu0 0
      %576 = vmatpush2.bf16.msra.mxu0 0
      %577 = vmatprep.subr.bf16.mxu0 0
      %578 = vmatpush2.bf16.msra.mxu0 0
      %579 = vmatprep.subr.bf16.mxu0 0
      %580 = vmatpush2.bf16.msra.mxu0 0
      %581 = vmatprep.subr.bf16.mxu0 0
      %582 = vmatpush2.bf16.msra.mxu0 0
      %583 = vmatprep.subr.bf16.mxu0 0
      %584 = vmatpush2.bf16.msra.mxu0 0
      %585 = vmatprep.subr.bf16.mxu0 0
      %586 = vmatpush2.bf16.msra.mxu0 0
      %587 = vmatprep.mubr.bf16.mxu0 0
      %588 = vmatmul.mubr.bf16.gmra.mxu0 %v540
      %v589 = vpop.f32.mrf.mxu0
      %v590 = vadd.f32 %v516, %v589
      %v591 = vpop.f32.mrf.mxu0
      %v592 = vpop.f32.mrf.mxu0
      %v593 = vadd.f32 %v516, %v592
      %v594 = vpop.f32.mrf.mxu0
      %595 = vmatprep.mubr.bf16.mxu0 0
      %596 = vmatmul.mubr.bf16.gmra.mxu0 %v543
      %v597 = vpop.f32.mrf.mxu0
      %v598 = vadd.f32 %v516, %v597
      %v599 = vpop.f32.mrf.mxu0
      %v600 = vpop.f32.mrf.mxu0
      %v601 = vadd.f32 %v516, %v600
      %v602 = vpop.f32.mrf.mxu0
      %603 = vmatprep.mubr.bf16.mxu0 0
      %604 = vmatmul.mubr.bf16.gmra.mxu0 %v546
      %v605 = vpop.f32.mrf.mxu0
      %v606 = vadd.f32 %v516, %v605
      %v607 = vpop.f32.mrf.mxu0
      %v608 = vpop.f32.mrf.mxu0
      %v609 = vadd.f32 %v516, %v608
      %v610 = vpop.f32.mrf.mxu0
      %611 = vmatprep.mubr.bf16.mxu0 0
      %612 = vmatmul.mubr.bf16.gmra.mxu0 %v549
      %v613 = vpop.f32.mrf.mxu0
      %v614 = vadd.f32 %v516, %v613
      %v615 = vpop.f32.mrf.mxu0
      %v616 = vpop.f32.mrf.mxu0
      %v617 = vadd.f32 %v516, %v616
      %v618 = vpop.f32.mrf.mxu0
      %619 = vdwg.mxu0
      %v620 = vmax.f32 %v590, 0.0
      %v621 = vmax.f32 %v593, 0.0
      %v622 = vmax.f32 %v598, 0.0
      %v623 = vmax.f32 %v601, 0.0
      %v624 = vmax.f32 %v606, 0.0
      %v625 = vmax.f32 %v609, 0.0
      %v626 = vmax.f32 %v614, 0.0
      %v627 = vmax.f32 %v617, 0.0
      %v628 = vld [vmem:[%s468] sm:$0xf]
      %v629 = vld [vmem:[%s468 + $0x4] sm:$0xf]
      %v632 = vunpack.c.l.b16 %v628
      %v633 = vunpack.c.l.b16 %v629
      %v634 = vpack.c.b16 %v633, %v632
      %v636 = vsel %vm538, %v634, 0
      %638 = vmatprep.subr.bf16.mxu0 0
      %639 = vmatpush1.bf16.msra.mxu0 0
      %640 = vmatprep.subr.bf16.mxu0 0
      %641 = vmatpush1.bf16.msra.mxu0 0
      %642 = vmatprep.subr.bf16.mxu0 0
      %643 = vmatpush1.bf16.msra.mxu0 0
      %644 = vmatprep.subr.bf16.mxu0 0
      %645 = vmatpush1.bf16.msra.mxu0 0
      %646 = vmatprep.subr.bf16.mxu0 0
      %647 = vmatpush1.bf16.msra.mxu0 0
      %648 = vmatprep.subr.bf16.mxu0 0
      %649 = vmatpush1.bf16.msra.mxu0 0
      %650 = vmatprep.subr.bf16.mxu0 0
      %651 = vmatpush1.bf16.msra.mxu0 0
      %652 = vmatprep.subr.bf16.mxu0 0
      %653 = vmatpush1.bf16.msra.mxu0 %v553
      %654 = vmatprep.subr.bf16.mxu0 0
      %655 = vmatpush2.bf16.msra.mxu0 0
      %656 = vmatprep.subr.bf16.mxu0 0
      %657 = vmatpush2.bf16.msra.mxu0 0
      %658 = vmatprep.subr.bf16.mxu0 0
      %659 = vmatpush2.bf16.msra.mxu0 0
      %660 = vmatprep.subr.bf16.mxu0 0
      %661 = vmatpush2.bf16.msra.mxu0 0
      %662 = vmatprep.subr.bf16.mxu0 0
      %663 = vmatpush2.bf16.msra.mxu0 0
      %664 = vmatprep.subr.bf16.mxu0 0
      %665 = vmatpush2.bf16.msra.mxu0 0
      %666 = vmatprep.subr.bf16.mxu0 0
      %667 = vmatpush2.bf16.msra.mxu0 0
      %668 = vmatprep.subr.bf16.mxu0 0
      %669 = vmatpush2.bf16.msra.mxu0 0
      %670 = vmatprep.mubr.bf16.mxu0 0
      %671 = vmatmul.mubr.bf16.gmra.mxu0 %v636
      %v672 = vpop.f32.mrf.mxu0
      %v673 = vadd.f32 %v516, %v672
      %v674 = vpop.f32.mrf.mxu0
      %v675 = vpop.f32.mrf.mxu0
      %v676 = vadd.f32 %v516, %v675
      %v677 = vpop.f32.mrf.mxu0
      %678 = vdwg.mxu0
      %v679 = vmax.f32 %v673, 0.0
      %v680 = vmax.f32 %v676, 0.0
      %v681 = vld [vmem:[%s485] sm:$0xf]
      %v682 = vld [vmem:[%s485 + $0x4] sm:$0xf]
      %v685 = vunpack.c.l.b16 %v681
      %v686 = vunpack.c.l.b16 %v682
      %v687 = vpack.c.b16 %v686, %v685
      %v689 = vsel %vm538, %v687, 0
      %691 = vmatprep.subr.bf16.mxu0 0
      %692 = vmatpush1.bf16.msra.mxu0 0
      %693 = vmatprep.subr.bf16.mxu0 0
      %694 = vmatpush1.bf16.msra.mxu0 0
      %695 = vmatprep.subr.bf16.mxu0 0
      %696 = vmatpush1.bf16.msra.mxu0 0
      %697 = vmatprep.subr.bf16.mxu0 0
      %698 = vmatpush1.bf16.msra.mxu0 0
      %699 = vmatprep.subr.bf16.mxu0 0
      %700 = vmatpush1.bf16.msra.mxu0 0
      %701 = vmatprep.subr.bf16.mxu0 0
      %702 = vmatpush1.bf16.msra.mxu0 0
      %703 = vmatprep.subr.bf16.mxu0 0
      %704 = vmatpush1.bf16.msra.mxu0 0
      %705 = vmatprep.subr.bf16.mxu0 0
      %706 = vmatpush1.bf16.msra.mxu0 %v553
      %707 = vmatprep.subr.bf16.mxu0 0
      %708 = vmatpush2.bf16.msra.mxu0 0
      %709 = vmatprep.subr.bf16.mxu0 0
      %710 = vmatpush2.bf16.msra.mxu0 0
      %711 = vmatprep.subr.bf16.mxu0 0
      %712 = vmatpush2.bf16.msra.mxu0 0
      %713 = vmatprep.subr.bf16.mxu0 0
      %714 = vmatpush2.bf16.msra.mxu0 0
      %715 = vmatprep.subr.bf16.mxu0 0
      %716 = vmatpush2.bf16.msra.mxu0 0
      %717 = vmatprep.subr.bf16.mxu0 0
      %718 = vmatpush2.bf16.msra.mxu0 0
      %719 = vmatprep.subr.bf16.mxu0 0
      %720 = vmatpush2.bf16.msra.mxu0 0
      %721 = vmatprep.subr.bf16.mxu0 0
      %722 = vmatpush2.bf16.msra.mxu0 0
      %723 = vmatprep.mubr.bf16.mxu0 0
      %724 = vmatmul.mubr.bf16.gmra.mxu0 %v689
      %v725 = vpop.f32.mrf.mxu0
      %v726 = vadd.f32 %v516, %v725
      %v727 = vpop.f32.mrf.mxu0
      %v728 = vpop.f32.mrf.mxu0
      %v729 = vadd.f32 %v516, %v728
      %v730 = vpop.f32.mrf.mxu0
      %731 = vdwg.mxu0
      %v732 = vmax.f32 %v726, 0.0
      %v733 = vmax.f32 %v729, 0.0
      %p734 = scmp.eq.s32.totalorder %s25, 0
      %s735 = scalar_select %p734, 1, 0
      %v736 = vstv %s735
      %vm737 = vcmp.eq.s32.totalorder %v736, 1
      %v738 = vsel %vm737, 0.0, %v679
      %v739 = vsel %vm737, 0.0, %v680
      %p740 = scmp.eq.s32.totalorder %s25, 3
      %s741 = scalar_select %p740, 1, 0
      %v742 = vstv %s741
      %vm743 = vcmp.eq.s32.totalorder %v742, 1
      %v744 = vsel %vm743, 0.0, %v732
      %v745 = vsel %vm743, 0.0, %v733
      %vm746 = vcmask 27648
      %747 = vst.msk [vmem:[#allocation2] sm:$0xf] %vm746, 0
      %748 = vst.msk [vmem:[#allocation2 + $0x4] sm:$0xf] %vm746, 0
      %vm749 = vcmask 24576
      %750 = vst.msk [vmem:[#allocation2 + $0x8] sm:$0x1] %vm749, 0
      %751 = vst.msk [vmem:[#allocation2 + $0xc] sm:$0xf] %vm746, 0
      %752 = vst.msk [vmem:[#allocation2 + $0x10] sm:$0xf] %vm746, 0
      %753 = vst.msk [vmem:[#allocation2 + $0x14] sm:$0x1] %vm749, 0
      %754 = vst.msk [vmem:[#allocation2 + $0x18] sm:$0xf] %vm746, 0
      %755 = vst.msk [vmem:[#allocation2 + $0x1c] sm:$0xf] %vm746, 0
      %756 = vst.msk [vmem:[#allocation2 + $0x20] sm:$0x1] %vm749, 0
      %757 = vst.msk [vmem:[#allocation2 + $0x24] sm:$0xf] %vm746, 0
      %758 = vst.msk [vmem:[#allocation2 + $0x28] sm:$0xf] %vm746, 0
      %759 = vst.msk [vmem:[#allocation2 + $0x2c] sm:$0x1] %vm749, 0
      %760 = vst.msk [vmem:[#allocation2 + $0x30] sm:$0xf] %vm746, 0
      %761 = vst.msk [vmem:[#allocation2 + $0x34] sm:$0xf] %vm746, 0
      %762 = vst.msk [vmem:[#allocation2 + $0x38] sm:$0x1] %vm749, 0
      %763 = vst.msk [vmem:[#allocation2 + $0x3c] sm:$0xf] %vm746, 0
      %764 = vst.msk [vmem:[#allocation2 + $0x40] sm:$0xf] %vm746, 0
      %765 = vst.msk [vmem:[#allocation2 + $0x44] sm:$0x1] %vm749, 0
      %v766 = vpack.c.bf16 %v739, %v738
      %v768 = vunpack.c.l.b16 %v766
      %v769 = vunpack.c.h.b16 %v766
      %v770 = vpack.c.b16 %v768, %v768
      %v771 = vpack.c.b16 %v769, %v769
      %vm772 = vsmask.f32 256
      %vm773 = vsmask.f32 4368
      %vm774 = vmor %vm772, %vm773
      %v776 = vshrl.u32 %v770, 16
      %v778 = vrot.slane %v776, 7
      %v779 = vshll.u32 %v770, 16
      %v781 = vor.u32 %v778, %v779
      %v782 = vrot.slane %v778, 4
      %v784 = vshrl.u32 %v771, 16
      %v786 = vrot.slane %v784, 7
      %v787 = vshll.u32 %v771, 16
      %v789 = vor.u32 %v786, %v787
      %v790 = vsel %vm774, %v782, %v789
      %v791 = vrot.slane %v786, 4
      %vm795 = vcmask 27648
      %vm796 = vsmask.f32 7938
      %vm797 = vmand %vm795, %vm796
      %v798 = vld [vmem:[#allocation2] sm:$0xf]
      %v799 = vsel %vm797, %v781, %v798
      %800 = vst [vmem:[#allocation2] sm:$0xf] %v799
      %801 = vst.msk [vmem:[#allocation2 + $0x4] sm:$0xf] %vm746, %v790
      %vm802 = vcmask 24576
      %vm803 = vmand %vm802, %vm772
      %v804 = vld [vmem:[#allocation2 + $0x8] sm:$0x1]
      %v805 = vsel %vm803, %v791, %v804
      %806 = vst [vmem:[#allocation2 + $0x8] sm:$0x1] %v805
      %v807 = vpack.c.bf16 %v621, %v620
      %v808 = vpack.c.bf16 %v623, %v622
      %v809 = vpack.c.bf16 %v625, %v624
      %v810 = vpack.c.bf16 %v627, %v626
      %v815 = vunpack.c.l.b16 %v807
      %v816 = vunpack.c.h.b16 %v807
      %v817 = vunpack.c.l.b16 %v808
      %v818 = vunpack.c.h.b16 %v808
      %v819 = vunpack.c.l.b16 %v809
      %v820 = vunpack.c.h.b16 %v809
      %v821 = vunpack.c.l.b16 %v810
      %v822 = vunpack.c.h.b16 %v810
      %v823 = vpack.c.b16 %v815, %v815
      %v824 = vpack.c.b16 %v816, %v816
      %v825 = vpack.c.b16 %v817, %v817
      %v826 = vpack.c.b16 %v818, %v818
      %v827 = vpack.c.b16 %v819, %v819
      %v828 = vpack.c.b16 %v820, %v820
      %v829 = vpack.c.b16 %v821, %v821
      %v830 = vpack.c.b16 %v822, %v822
      %v832 = vshrl.u32 %v823, 16
      %v834 = vrot.slane %v832, 7
      %v835 = vshll.u32 %v823, 16
      %v837 = vor.u32 %v834, %v835
      %v838 = vrot.slane %v834, 4
      %v840 = vshrl.u32 %v824, 16
      %v842 = vrot.slane %v840, 7
      %v843 = vshll.u32 %v824, 16
      %v845 = vor.u32 %v842, %v843
      %v846 = vsel %vm774, %v838, %v845
      %v847 = vrot.slane %v842, 4
      %v849 = vshrl.u32 %v825, 16
      %v851 = vrot.slane %v849, 7
      %v852 = vshll.u32 %v825, 16
      %v854 = vor.u32 %v851, %v852
      %v855 = vrot.slane %v851, 4
      %v857 = vshrl.u32 %v826, 16
      %v859 = vrot.slane %v857, 7
      %v860 = vshll.u32 %v826, 16
      %v862 = vor.u32 %v859, %v860
      %v863 = vsel %vm774, %v855, %v862
      %v864 = vrot.slane %v859, 4
      %v866 = vshrl.u32 %v827, 16
      %v868 = vrot.slane %v866, 7
      %v869 = vshll.u32 %v827, 16
      %v871 = vor.u32 %v868, %v869
      %v872 = vrot.slane %v868, 4
      %v874 = vshrl.u32 %v828, 16
      %v876 = vrot.slane %v874, 7
      %v877 = vshll.u32 %v828, 16
      %v879 = vor.u32 %v876, %v877
      %v880 = vsel %vm774, %v872, %v879
      %v881 = vrot.slane %v876, 4
      %v883 = vshrl.u32 %v829, 16
      %v885 = vrot.slane %v883, 7
      %v886 = vshll.u32 %v829, 16
      %v888 = vor.u32 %v885, %v886
      %v889 = vrot.slane %v885, 4
      %v891 = vshrl.u32 %v830, 16
      %v893 = vrot.slane %v891, 7
      %v894 = vshll.u32 %v830, 16
      %v896 = vor.u32 %v893, %v894
      %v897 = vsel %vm774, %v889, %v896
      %v898 = vrot.slane %v893, 4
      %s911 = scalar_lea.vmem [#allocation2], 12
      %v912 = vld [vmem:[%s911] sm:$0xf]
      %v913 = vsel %vm797, %v837, %v912
      %914 = vst [vmem:[%s911] sm:$0xf] %v913
      %915 = vst.msk [vmem:[%s911 + $0x4] sm:$0xf] %vm746, %v846
      %v916 = vld [vmem:[%s911 + $0x8] sm:$0x1]
      %v917 = vsel %vm803, %v847, %v916
      %918 = vst [vmem:[%s911 + $0x8] sm:$0x1] %v917
      %v919 = vld [vmem:[%s911 + $0xc] sm:$0xf]
      %v920 = vsel %vm797, %v854, %v919
      %921 = vst [vmem:[%s911 + $0xc] sm:$0xf] %v920
      %922 = vst.msk [vmem:[%s911 + $0x10] sm:$0xf] %vm746, %v863
      %v923 = vld [vmem:[%s911 + $0x14] sm:$0x1]
      %v924 = vsel %vm803, %v864, %v923
      %925 = vst [vmem:[%s911 + $0x14] sm:$0x1] %v924
      %v926 = vld [vmem:[%s911 + $0x18] sm:$0xf]
      %v927 = vsel %vm797, %v871, %v926
      %928 = vst [vmem:[%s911 + $0x18] sm:$0xf] %v927
      %929 = vst.msk [vmem:[%s911 + $0x1c] sm:$0xf] %vm746, %v880
      %v930 = vld [vmem:[%s911 + $0x20] sm:$0x1]
      %v931 = vsel %vm803, %v881, %v930
      %932 = vst [vmem:[%s911 + $0x20] sm:$0x1] %v931
      %v933 = vld [vmem:[%s911 + $0x24] sm:$0xf]
      %v934 = vsel %vm797, %v888, %v933
      %935 = vst [vmem:[%s911 + $0x24] sm:$0xf] %v934
      %936 = vst.msk [vmem:[%s911 + $0x28] sm:$0xf] %vm746, %v897
      %v937 = vld [vmem:[%s911 + $0x2c] sm:$0x1]
      %v938 = vsel %vm803, %v898, %v937
      %939 = vst [vmem:[%s911 + $0x2c] sm:$0x1] %v938
      %v940 = vpack.c.bf16 %v745, %v744
      %v942 = vunpack.c.l.b16 %v940
      %v943 = vunpack.c.h.b16 %v940
      %v944 = vpack.c.b16 %v942, %v942
      %v945 = vpack.c.b16 %v943, %v943
      %v947 = vshrl.u32 %v944, 16
      %v949 = vrot.slane %v947, 7
      %v950 = vshll.u32 %v944, 16
      %v952 = vor.u32 %v949, %v950
      %v953 = vrot.slane %v949, 4
      %v955 = vshrl.u32 %v945, 16
      %v957 = vrot.slane %v955, 7
      %v958 = vshll.u32 %v945, 16
      %v960 = vor.u32 %v957, %v958
      %v961 = vsel %vm774, %v953, %v960
      %v962 = vrot.slane %v957, 4
      %s966 = scalar_lea.vmem [#allocation2], 60
      %v967 = vld [vmem:[%s966] sm:$0xf]
      %v968 = vsel %vm797, %v952, %v967
      %969 = vst [vmem:[%s966] sm:$0xf] %v968
      %970 = vst.msk [vmem:[%s966 + $0x4] sm:$0xf] %vm746, %v961
      %v971 = vld [vmem:[%s966 + $0x8] sm:$0x1]
      %v972 = vsel %vm803, %v962, %v971
      %973 = vst [vmem:[%s966 + $0x8] sm:$0x1] %v972
      %v974 = vld [vmem:[#allocation2] sm:$0xf]
      %v975 = vld [vmem:[#allocation2 + $0x4] sm:$0xf]
      %v976 = vld [vmem:[#allocation2 + $0xc] sm:$0xf]
      %v977 = vld [vmem:[#allocation2 + $0x10] sm:$0xf]
      %v978 = vld [vmem:[#allocation2 + $0x18] sm:$0xf]
      %v979 = vld [vmem:[#allocation2 + $0x1c] sm:$0xf]
      %v980 = vld [vmem:[#allocation2 + $0x24] sm:$0xf]
      %v981 = vld [vmem:[#allocation2 + $0x28] sm:$0xf]
      %v982 = vld [vmem:[%s5] sm:$0x3]
      %v983 = vld [vmem:[#allocation2 + $0x8] sm:$0x1]
      %v984 = vld [vmem:[#allocation2 + $0x14] sm:$0x1]
      %v985 = vld [vmem:[#allocation2 + $0x20] sm:$0x1]
      %v986 = vld [vmem:[#allocation2 + $0x2c] sm:$0x1]
      %vm987 = vsmask.f32 3328
      %vm988 = vsmask.f32 7440
      %vm989 = vmor %vm987, %vm988
      %v991 = vshrl.u32 %v974, 16
      %v993 = vrot.slane %v991, 4
      %v994 = vshll.u32 %v974, 16
      %v996 = vrot.slane %v994, 5
      %v997 = vor.u32 %v993, %v996
      %v998 = vrot.slane %v997, 4
      %v1000 = vshll.u32 %v975, 16
      %v1002 = vrot.slane %v1000, 5
      %v1003 = vsel %vm989, %v998, %v1002
      %v1004 = vshrl.u32 %v975, 16
      %v1006 = vrot.slane %v1004, 4
      %v1007 = vor.u32 %v1006, %v1002
      %v1008 = vrot.slane %v1007, 4
      %v1010 = vshll.u32 %v983, 16
      %v1012 = vrot.slane %v1010, 5
      %v1013 = vsel %vm989, %v1008, %v1012
      %v1015 = vshrl.u32 %v976, 16
      %v1017 = vrot.slane %v1015, 4
      %v1018 = vshll.u32 %v976, 16
      %v1020 = vrot.slane %v1018, 5
      %v1021 = vor.u32 %v1017, %v1020
      %v1022 = vrot.slane %v1021, 4
      %v1024 = vshll.u32 %v977, 16
      %v1026 = vrot.slane %v1024, 5
      %v1027 = vsel %vm989, %v1022, %v1026
      %v1028 = vshrl.u32 %v977, 16
      %v1030 = vrot.slane %v1028, 4
      %v1031 = vor.u32 %v1030, %v1026
      %v1032 = vrot.slane %v1031, 4
      %v1034 = vshll.u32 %v984, 16
      %v1036 = vrot.slane %v1034, 5
      %v1037 = vsel %vm989, %v1032, %v1036
      %v1039 = vshrl.u32 %v978, 16
      %v1041 = vrot.slane %v1039, 4
      %v1042 = vshll.u32 %v978, 16
      %v1044 = vrot.slane %v1042, 5
      %v1045 = vor.u32 %v1041, %v1044
      %v1046 = vrot.slane %v1045, 4
      %v1048 = vshll.u32 %v979, 16
      %v1050 = vrot.slane %v1048, 5
      %v1051 = vsel %vm989, %v1046, %v1050
      %v1052 = vshrl.u32 %v979, 16
      %v1054 = vrot.slane %v1052, 4
      %v1055 = vor.u32 %v1054, %v1050
      %v1056 = vrot.slane %v1055, 4
      %v1058 = vshll.u32 %v985, 16
      %v1060 = vrot.slane %v1058, 5
      %v1061 = vsel %vm989, %v1056, %v1060
      %v1063 = vshrl.u32 %v980, 16
      %v1065 = vrot.slane %v1063, 4
      %v1066 = vshll.u32 %v980, 16
      %v1068 = vrot.slane %v1066, 5
      %v1069 = vor.u32 %v1065, %v1068
      %v1070 = vrot.slane %v1069, 4
      %v1072 = vshll.u32 %v981, 16
      %v1074 = vrot.slane %v1072, 5
      %v1075 = vsel %vm989, %v1070, %v1074
      %v1076 = vshrl.u32 %v981, 16
      %v1078 = vrot.slane %v1076, 4
      %v1079 = vor.u32 %v1078, %v1074
      %v1080 = vrot.slane %v1079, 4
      %v1082 = vshll.u32 %v986, 16
      %v1084 = vrot.slane %v1082, 5
      %v1085 = vsel %vm989, %v1080, %v1084
      %s1086 = scalar_lea.vmem %s5, 2
      %v1087 = vld [vmem:[%s1086] sm:$0x3]
      %v1088 = vunpack.c.l.b16 %v1003
      %v1089 = vunpack.c.l.b16 %v1013
      %v1090 = vunpack.c.l.b16 %v1027
      %v1091 = vunpack.c.l.b16 %v1037
      %v1092 = vunpack.c.l.b16 %v1051
      %v1093 = vunpack.c.l.b16 %v1061
      %v1094 = vunpack.c.l.b16 %v1075
      %v1095 = vunpack.c.l.b16 %v1085
      %v1096 = vpack.c.b16 %v1089, %v1088
      %v1097 = vpack.c.b16 %v1091, %v1090
      %v1098 = vpack.c.b16 %v1093, %v1092
      %v1099 = vpack.c.b16 %v1095, %v1094
      %vm1100 = vcmask 31744
      %v1102 = vsel %vm1100, %v1096, 0
      %v1105 = vsel %vm1100, %v1097, 0
      %v1108 = vsel %vm1100, %v1098, 0
      %v1111 = vsel %vm1100, %v1099, 0
      %vm1113 = vcmask 1041408
      %v1115 = vsel %vm1113, %v1087, 0
      %1117 = vmatprep.subr.bf16.mxu0 0
      %1118 = vmatpush1.bf16.msra.mxu0 0
      %1119 = vmatprep.subr.bf16.mxu0 0
      %1120 = vmatpush1.bf16.msra.mxu0 0
      %1121 = vmatprep.subr.bf16.mxu0 0
      %1122 = vmatpush1.bf16.msra.mxu0 0
      %1123 = vmatprep.subr.bf16.mxu0 0
      %1124 = vmatpush1.bf16.msra.mxu0 0
      %1125 = vmatprep.subr.bf16.mxu0 0
      %1126 = vmatpush1.bf16.msra.mxu0 0
      %1127 = vmatprep.subr.bf16.mxu0 0
      %1128 = vmatpush1.bf16.msra.mxu0 0
      %1129 = vmatprep.subr.bf16.mxu0 0
      %1130 = vmatpush1.bf16.msra.mxu0 0
      %1131 = vmatprep.subr.bf16.mxu0 0
      %1132 = vmatpush1.bf16.msra.mxu0 %v1115
      %1133 = vmatprep.subr.bf16.mxu0 0
      %1134 = vmatpush2.bf16.msra.mxu0 0
      %1135 = vmatprep.subr.bf16.mxu0 0
      %1136 = vmatpush2.bf16.msra.mxu0 0
      %1137 = vmatprep.subr.bf16.mxu0 0
      %1138 = vmatpush2.bf16.msra.mxu0 0
      %1139 = vmatprep.subr.bf16.mxu0 0
      %1140 = vmatpush2.bf16.msra.mxu0 0
      %1141 = vmatprep.subr.bf16.mxu0 0
      %1142 = vmatpush2.bf16.msra.mxu0 0
      %1143 = vmatprep.subr.bf16.mxu0 0
      %1144 = vmatpush2.bf16.msra.mxu0 0
      %1145 = vmatprep.subr.bf16.mxu0 0
      %1146 = vmatpush2.bf16.msra.mxu0 0
      %1147 = vmatprep.subr.bf16.mxu0 0
      %1148 = vmatpush2.bf16.msra.mxu0 0
      %1149 = vmatprep.mubr.bf16.mxu0 0
      %1150 = vmatmul.mubr.bf16.gmra.mxu0 %v1102
      %v1151 = vpop.f32.mrf.mxu0
      %v1152 = vadd.f32 0.0, %v1151
      %v1153 = vpop.f32.mrf.mxu0
      %v1154 = vpop.f32.mrf.mxu0
      %v1155 = vadd.f32 0.0, %v1154
      %v1156 = vpop.f32.mrf.mxu0
      %1157 = vmatprep.mubr.bf16.mxu0 0
      %1158 = vmatmul.mubr.bf16.gmra.mxu0 %v1105
      %v1159 = vpop.f32.mrf.mxu0
      %v1160 = vadd.f32 0.0, %v1159
      %v1161 = vpop.f32.mrf.mxu0
      %v1162 = vpop.f32.mrf.mxu0
      %v1163 = vadd.f32 0.0, %v1162
      %v1164 = vpop.f32.mrf.mxu0
      %1165 = vmatprep.mubr.bf16.mxu0 0
      %1166 = vmatmul.mubr.bf16.gmra.mxu0 %v1108
      %v1167 = vpop.f32.mrf.mxu0
      %v1168 = vadd.f32 0.0, %v1167
      %v1169 = vpop.f32.mrf.mxu0
      %v1170 = vpop.f32.mrf.mxu0
      %v1171 = vadd.f32 0.0, %v1170
      %v1172 = vpop.f32.mrf.mxu0
      %1173 = vmatprep.mubr.bf16.mxu0 0
      %1174 = vmatmul.mubr.bf16.gmra.mxu0 %v1111
      %v1175 = vpop.f32.mrf.mxu0
      %v1176 = vadd.f32 0.0, %v1175
      %v1177 = vpop.f32.mrf.mxu0
      %v1178 = vpop.f32.mrf.mxu0
      %v1179 = vadd.f32 0.0, %v1178
      %v1180 = vpop.f32.mrf.mxu0
      %1181 = vdwg.mxu0
      %v1190 = vunpack.c.l.b16 %v974
      %v1191 = vunpack.c.l.b16 %v975
      %v1192 = vunpack.c.l.b16 %v976
      %v1193 = vunpack.c.l.b16 %v977
      %v1194 = vunpack.c.l.b16 %v978
      %v1195 = vunpack.c.l.b16 %v979
      %v1196 = vunpack.c.l.b16 %v980
      %v1197 = vunpack.c.l.b16 %v981
      %v1198 = vpack.c.b16 %v1191, %v1190
      %v1199 = vpack.c.b16 %v1193, %v1192
      %v1200 = vpack.c.b16 %v1195, %v1194
      %v1201 = vpack.c.b16 %v1197, %v1196
      %v1203 = vsel %vm1100, %v1198, 0
      %v1206 = vsel %vm1100, %v1199, 0
      %v1209 = vsel %vm1100, %v1200, 0
      %v1212 = vsel %vm1100, %v1201, 0
      %v1215 = vsel %vm1113, %v982, 0
      %1217 = vmatprep.subr.bf16.mxu0 0
      %1218 = vmatpush1.bf16.msra.mxu0 0
      %1219 = vmatprep.subr.bf16.mxu0 0
      %1220 = vmatpush1.bf16.msra.mxu0 0
      %1221 = vmatprep.subr.bf16.mxu0 0
      %1222 = vmatpush1.bf16.msra.mxu0 0
      %1223 = vmatprep.subr.bf16.mxu0 0
      %1224 = vmatpush1.bf16.msra.mxu0 0
      %1225 = vmatprep.subr.bf16.mxu0 0
      %1226 = vmatpush1.bf16.msra.mxu0 0
      %1227 = vmatprep.subr.bf16.mxu0 0
      %1228 = vmatpush1.bf16.msra.mxu0 0
      %1229 = vmatprep.subr.bf16.mxu0 0
      %1230 = vmatpush1.bf16.msra.mxu0 0
      %1231 = vmatprep.subr.bf16.mxu0 0
      %1232 = vmatpush1.bf16.msra.mxu0 %v1215
      %1233 = vmatprep.subr.bf16.mxu0 0
      %1234 = vmatpush2.bf16.msra.mxu0 0
      %1235 = vmatprep.subr.bf16.mxu0 0
      %1236 = vmatpush2.bf16.msra.mxu0 0
      %1237 = vmatprep.subr.bf16.mxu0 0
      %1238 = vmatpush2.bf16.msra.mxu0 0
      %1239 = vmatprep.subr.bf16.mxu0 0
      %1240 = vmatpush2.bf16.msra.mxu0 0
      %1241 = vmatprep.subr.bf16.mxu0 0
      %1242 = vmatpush2.bf16.msra.mxu0 0
      %1243 = vmatprep.subr.bf16.mxu0 0
      %1244 = vmatpush2.bf16.msra.mxu0 0
      %1245 = vmatprep.subr.bf16.mxu0 0
      %1246 = vmatpush2.bf16.msra.mxu0 0
      %1247 = vmatprep.subr.bf16.mxu0 0
      %1248 = vmatpush2.bf16.msra.mxu0 0
      %1249 = vmatprep.mubr.bf16.mxu0 0
      %1250 = vmatmul.mubr.bf16.gmra.mxu0 %v1203
      %v1251 = vpop.f32.mrf.mxu0
      %v1252 = vadd.f32 %v1152, %v1251
      %v1253 = vpop.f32.mrf.mxu0
      %v1254 = vpop.f32.mrf.mxu0
      %v1255 = vadd.f32 %v1155, %v1254
      %v1256 = vpop.f32.mrf.mxu0
      %1257 = vmatprep.mubr.bf16.mxu0 0
      %1258 = vmatmul.mubr.bf16.gmra.mxu0 %v1206
      %v1259 = vpop.f32.mrf.mxu0
      %v1260 = vadd.f32 %v1160, %v1259
      %v1261 = vpop.f32.mrf.mxu0
      %v1262 = vpop.f32.mrf.mxu0
      %v1263 = vadd.f32 %v1163, %v1262
      %v1264 = vpop.f32.mrf.mxu0
      %1265 = vmatprep.mubr.bf16.mxu0 0
      %1266 = vmatmul.mubr.bf16.gmra.mxu0 %v1209
      %v1267 = vpop.f32.mrf.mxu0
      %v1268 = vadd.f32 %v1168, %v1267
      %v1269 = vpop.f32.mrf.mxu0
      %v1270 = vpop.f32.mrf.mxu0
      %v1271 = vadd.f32 %v1171, %v1270
      %v1272 = vpop.f32.mrf.mxu0
      %1273 = vmatprep.mubr.bf16.mxu0 0
      %1274 = vmatmul.mubr.bf16.gmra.mxu0 %v1212
      %v1275 = vpop.f32.mrf.mxu0
      %v1276 = vadd.f32 %v1176, %v1275
      %v1277 = vpop.f32.mrf.mxu0
      %v1278 = vpop.f32.mrf.mxu0
      %v1279 = vadd.f32 %v1179, %v1278
      %v1280 = vpop.f32.mrf.mxu0
      %1281 = vdwg.mxu0
      %v1282 = vld [vmem:[#allocation2] sm:$0xe]
      %v1283 = vld [vmem:[#allocation2 + $0xc] sm:$0xe]
      %v1284 = vld [vmem:[#allocation2 + $0x18] sm:$0xe]
      %v1285 = vld [vmem:[#allocation2 + $0x24] sm:$0xe]
      %vm1294 = vcmask 1042432
      %vm1295 = vcmask 1046532
      %vm1296 = vmor %vm1294, %vm1295
      %v1297 = vrot.slane %v1282, 5
      %v1298 = vrot.slane %v1297, 4
      %v1299 = vrot.slane %v975, 5
      %v1300 = vsel %vm1296, %v1298, %v1299
      %v1301 = vrot.slane %v1299, 4
      %v1302 = vrot.slane %v983, 5
      %v1303 = vsel %vm1296, %v1301, %v1302
      %v1304 = vrot.slane %v1283, 5
      %v1305 = vrot.slane %v1304, 4
      %v1306 = vrot.slane %v977, 5
      %v1307 = vsel %vm1296, %v1305, %v1306
      %v1308 = vrot.slane %v1306, 4
      %v1309 = vrot.slane %v984, 5
      %v1310 = vsel %vm1296, %v1308, %v1309
      %v1311 = vrot.slane %v1284, 5
      %v1312 = vrot.slane %v1311, 4
      %v1313 = vrot.slane %v979, 5
      %v1314 = vsel %vm1296, %v1312, %v1313
      %v1315 = vrot.slane %v1313, 4
      %v1316 = vrot.slane %v985, 5
      %v1317 = vsel %vm1296, %v1315, %v1316
      %v1318 = vrot.slane %v1285, 5
      %v1319 = vrot.slane %v1318, 4
      %v1320 = vrot.slane %v981, 5
      %v1321 = vsel %vm1296, %v1319, %v1320
      %v1322 = vrot.slane %v1320, 4
      %v1323 = vrot.slane %v986, 5
      %v1324 = vsel %vm1296, %v1322, %v1323
      %s1325 = scalar_lea.vmem %s5, 4
      %v1326 = vld [vmem:[%s1325] sm:$0x3]
      %v1327 = vunpack.c.l.b16 %v1300
      %v1328 = vunpack.c.l.b16 %v1303
      %v1329 = vunpack.c.l.b16 %v1307
      %v1330 = vunpack.c.l.b16 %v1310
      %v1331 = vunpack.c.l.b16 %v1314
      %v1332 = vunpack.c.l.b16 %v1317
      %v1333 = vunpack.c.l.b16 %v1321
      %v1334 = vunpack.c.l.b16 %v1324
      %v1335 = vpack.c.b16 %v1328, %v1327
      %v1336 = vpack.c.b16 %v1330, %v1329
      %v1337 = vpack.c.b16 %v1332, %v1331
      %v1338 = vpack.c.b16 %v1334, %v1333
      %v1340 = vsel %vm1100, %v1335, 0
      %v1343 = vsel %vm1100, %v1336, 0
      %v1346 = vsel %vm1100, %v1337, 0
      %v1349 = vsel %vm1100, %v1338, 0
      %v1352 = vsel %vm1113, %v1326, 0
      %1354 = vmatprep.subr.bf16.mxu0 0
      %1355 = vmatpush1.bf16.msra.mxu0 0
      %1356 = vmatprep.subr.bf16.mxu0 0
      %1357 = vmatpush1.bf16.msra.mxu0 0
      %1358 = vmatprep.subr.bf16.mxu0 0
      %1359 = vmatpush1.bf16.msra.mxu0 0
      %1360 = vmatprep.subr.bf16.mxu0 0
      %1361 = vmatpush1.bf16.msra.mxu0 0
      %1362 = vmatprep.subr.bf16.mxu0 0
      %1363 = vmatpush1.bf16.msra.mxu0 0
      %1364 = vmatprep.subr.bf16.mxu0 0
      %1365 = vmatpush1.bf16.msra.mxu0 0
      %1366 = vmatprep.subr.bf16.mxu0 0
      %1367 = vmatpush1.bf16.msra.mxu0 0
      %1368 = vmatprep.subr.bf16.mxu0 0
      %1369 = vmatpush1.bf16.msra.mxu0 %v1352
      %1370 = vmatprep.subr.bf16.mxu0 0
      %1371 = vmatpush2.bf16.msra.mxu0 0
      %1372 = vmatprep.subr.bf16.mxu0 0
      %1373 = vmatpush2.bf16.msra.mxu0 0
      %1374 = vmatprep.subr.bf16.mxu0 0
      %1375 = vmatpush2.bf16.msra.mxu0 0
      %1376 = vmatprep.subr.bf16.mxu0 0
      %1377 = vmatpush2.bf16.msra.mxu0 0
      %1378 = vmatprep.subr.bf16.mxu0 0
      %1379 = vmatpush2.bf16.msra.mxu0 0
      %1380 = vmatprep.subr.bf16.mxu0 0
      %1381 = vmatpush2.bf16.msra.mxu0 0
      %1382 = vmatprep.subr.bf16.mxu0 0
      %1383 = vmatpush2.bf16.msra.mxu0 0
      %1384 = vmatprep.subr.bf16.mxu0 0
      %1385 = vmatpush2.bf16.msra.mxu0 0
      %1386 = vmatprep.mubr.bf16.mxu0 0
      %1387 = vmatmul.mubr.bf16.gmra.mxu0 %v1340
      %v1388 = vpop.f32.mrf.mxu0
      %v1389 = vadd.f32 0.0, %v1388
      %v1390 = vpop.f32.mrf.mxu0
      %v1391 = vpop.f32.mrf.mxu0
      %v1392 = vadd.f32 0.0, %v1391
      %v1393 = vpop.f32.mrf.mxu0
      %1394 = vmatprep.mubr.bf16.mxu0 0
      %1395 = vmatmul.mubr.bf16.gmra.mxu0 %v1343
      %v1396 = vpop.f32.mrf.mxu0
      %v1397 = vadd.f32 0.0, %v1396
      %v1398 = vpop.f32.mrf.mxu0
      %v1399 = vpop.f32.mrf.mxu0
      %v1400 = vadd.f32 0.0, %v1399
      %v1401 = vpop.f32.mrf.mxu0
      %1402 = vmatprep.mubr.bf16.mxu0 0
      %1403 = vmatmul.mubr.bf16.gmra.mxu0 %v1346
      %v1404 = vpop.f32.mrf.mxu0
      %v1405 = vadd.f32 0.0, %v1404
      %v1406 = vpop.f32.mrf.mxu0
      %v1407 = vpop.f32.mrf.mxu0
      %v1408 = vadd.f32 0.0, %v1407
      %v1409 = vpop.f32.mrf.mxu0
      %1410 = vmatprep.mubr.bf16.mxu0 0
      %1411 = vmatmul.mubr.bf16.gmra.mxu0 %v1349
      %v1412 = vpop.f32.mrf.mxu0
      %v1413 = vadd.f32 0.0, %v1412
      %v1414 = vpop.f32.mrf.mxu0
      %v1415 = vpop.f32.mrf.mxu0
      %v1416 = vadd.f32 0.0, %v1415
      %v1417 = vpop.f32.mrf.mxu0
      %1418 = vdwg.mxu0
      %v1419 = vadd.f32 %v1252, %v1389
      %v1420 = vadd.f32 %v1255, %v1392
      %v1421 = vadd.f32 %v1260, %v1397
      %v1422 = vadd.f32 %v1263, %v1400
      %v1423 = vadd.f32 %v1268, %v1405
      %v1424 = vadd.f32 %v1271, %v1408
      %v1425 = vadd.f32 %v1276, %v1413
      %v1426 = vadd.f32 %v1279, %v1416
      %v1427 = vld [vmem:[%s911] sm:$0xf]
      %v1428 = vld [vmem:[%s911 + $0x4] sm:$0xf]
      %v1429 = vld [vmem:[%s911 + $0xc] sm:$0xf]
      %v1430 = vld [vmem:[%s911 + $0x10] sm:$0xf]
      %v1431 = vld [vmem:[%s911 + $0x18] sm:$0xf]
      %v1432 = vld [vmem:[%s911 + $0x1c] sm:$0xf]
      %v1433 = vld [vmem:[%s911 + $0x24] sm:$0xf]
      %v1434 = vld [vmem:[%s911 + $0x28] sm:$0xf]
      %s1435 = scalar_lea.vmem %s5, 6
      %v1436 = vld [vmem:[%s1435] sm:$0x3]
      %v1445 = vunpack.c.l.b16 %v1427
      %v1446 = vunpack.c.l.b16 %v1428
      %v1447 = vunpack.c.l.b16 %v1429
      %v1448 = vunpack.c.l.b16 %v1430
      %v1449 = vunpack.c.l.b16 %v1431
      %v1450 = vunpack.c.l.b16 %v1432
      %v1451 = vunpack.c.l.b16 %v1433
      %v1452 = vunpack.c.l.b16 %v1434
      %v1453 = vpack.c.b16 %v1446, %v1445
      %v1454 = vpack.c.b16 %v1448, %v1447
      %v1455 = vpack.c.b16 %v1450, %v1449
      %v1456 = vpack.c.b16 %v1452, %v1451
      %v1458 = vsel %vm1100, %v1453, 0
      %v1461 = vsel %vm1100, %v1454, 0
      %v1464 = vsel %vm1100, %v1455, 0
      %v1467 = vsel %vm1100, %v1456, 0
      %v1470 = vsel %vm1113, %v1436, 0
      %1472 = vmatprep.subr.bf16.mxu0 0
      %1473 = vmatpush1.bf16.msra.mxu0 0
      %1474 = vmatprep.subr.bf16.mxu0 0
      %1475 = vmatpush1.bf16.msra.mxu0 0
      %1476 = vmatprep.subr.bf16.mxu0 0
      %1477 = vmatpush1.bf16.msra.mxu0 0
      %1478 = vmatprep.subr.bf16.mxu0 0
      %1479 = vmatpush1.bf16.msra.mxu0 0
      %1480 = vmatprep.subr.bf16.mxu0 0
      %1481 = vmatpush1.bf16.msra.mxu0 0
      %1482 = vmatprep.subr.bf16.mxu0 0
      %1483 = vmatpush1.bf16.msra.mxu0 0
      %1484 = vmatprep.subr.bf16.mxu0 0
      %1485 = vmatpush1.bf16.msra.mxu0 0
      %1486 = vmatprep.subr.bf16.mxu0 0
      %1487 = vmatpush1.bf16.msra.mxu0 %v1470
      %1488 = vmatprep.subr.bf16.mxu0 0
      %1489 = vmatpush2.bf16.msra.mxu0 0
      %1490 = vmatprep.subr.bf16.mxu0 0
      %1491 = vmatpush2.bf16.msra.mxu0 0
      %1492 = vmatprep.subr.bf16.mxu0 0
      %1493 = vmatpush2.bf16.msra.mxu0 0
      %1494 = vmatprep.subr.bf16.mxu0 0
      %1495 = vmatpush2.bf16.msra.mxu0 0
      %1496 = vmatprep.subr.bf16.mxu0 0
      %1497 = vmatpush2.bf16.msra.mxu0 0
      %1498 = vmatprep.subr.bf16.mxu0 0
      %1499 = vmatpush2.bf16.msra.mxu0 0
      %1500 = vmatprep.subr.bf16.mxu0 0
      %1501 = vmatpush2.bf16.msra.mxu0 0
      %1502 = vmatprep.subr.bf16.mxu0 0
      %1503 = vmatpush2.bf16.msra.mxu0 0
      %1504 = vmatprep.mubr.bf16.mxu0 0
      %1505 = vmatmul.mubr.bf16.gmra.mxu0 %v1458
      %v1506 = vpop.f32.mrf.mxu0
      %v1507 = vadd.f32 0.0, %v1506
      %v1508 = vpop.f32.mrf.mxu0
      %v1509 = vpop.f32.mrf.mxu0
      %v1510 = vadd.f32 0.0, %v1509
      %v1511 = vpop.f32.mrf.mxu0
      %1512 = vmatprep.mubr.bf16.mxu0 0
      %1513 = vmatmul.mubr.bf16.gmra.mxu0 %v1461
      %v1514 = vpop.f32.mrf.mxu0
      %v1515 = vadd.f32 0.0, %v1514
      %v1516 = vpop.f32.mrf.mxu0
      %v1517 = vpop.f32.mrf.mxu0
      %v1518 = vadd.f32 0.0, %v1517
      %v1519 = vpop.f32.mrf.mxu0
      %1520 = vmatprep.mubr.bf16.mxu0 0
      %1521 = vmatmul.mubr.bf16.gmra.mxu0 %v1464
      %v1522 = vpop.f32.mrf.mxu0
      %v1523 = vadd.f32 0.0, %v1522
      %v1524 = vpop.f32.mrf.mxu0
      %v1525 = vpop.f32.mrf.mxu0
      %v1526 = vadd.f32 0.0, %v1525
      %v1527 = vpop.f32.mrf.mxu0
      %1528 = vmatprep.mubr.bf16.mxu0 0
      %1529 = vmatmul.mubr.bf16.gmra.mxu0 %v1467
      %v1530 = vpop.f32.mrf.mxu0
      %v1531 = vadd.f32 0.0, %v1530
      %v1532 = vpop.f32.mrf.mxu0
      %v1533 = vpop.f32.mrf.mxu0
      %v1534 = vadd.f32 0.0, %v1533
      %v1535 = vpop.f32.mrf.mxu0
      %1536 = vdwg.mxu0
      %v1537 = vadd.f32 %v1419, %v1507
      %v1538 = vadd.f32 %v1420, %v1510
      %v1539 = vadd.f32 %v1421, %v1515
      %v1540 = vadd.f32 %v1422, %v1518
      %v1541 = vadd.f32 %v1423, %v1523
      %v1542 = vadd.f32 %v1424, %v1526
      %v1543 = vadd.f32 %v1425, %v1531
      %v1544 = vadd.f32 %v1426, %v1534
      %v1545 = vld [vmem:[%s911] sm:$0xf]
      %v1546 = vld [vmem:[%s911 + $0x4] sm:$0xf]
      %v1547 = vld [vmem:[%s911 + $0x8] sm:$0x1]
      %v1548 = vld [vmem:[%s911 + $0xc] sm:$0xf]
      %v1549 = vld [vmem:[%s911 + $0x10] sm:$0xf]
      %v1550 = vld [vmem:[%s911 + $0x14] sm:$0x1]
      %v1551 = vld [vmem:[%s911 + $0x18] sm:$0xf]
      %v1552 = vld [vmem:[%s911 + $0x1c] sm:$0xf]
      %v1553 = vld [vmem:[%s911 + $0x20] sm:$0x1]
      %v1554 = vld [vmem:[%s911 + $0x24] sm:$0xf]
      %v1555 = vld [vmem:[%s911 + $0x28] sm:$0xf]
      %v1556 = vld [vmem:[%s911 + $0x2c] sm:$0x1]
      %v1558 = vshrl.u32 %v1545, 16
      %v1560 = vrot.slane %v1558, 4
      %v1561 = vshll.u32 %v1545, 16
      %v1563 = vrot.slane %v1561, 5
      %v1564 = vor.u32 %v1560, %v1563
      %v1565 = vrot.slane %v1564, 4
      %v1567 = vshll.u32 %v1546, 16
      %v1569 = vrot.slane %v1567, 5
      %v1570 = vsel %vm989, %v1565, %v1569
      %v1571 = vshrl.u32 %v1546, 16
      %v1573 = vrot.slane %v1571, 4
      %v1574 = vor.u32 %v1573, %v1569
      %v1575 = vrot.slane %v1574, 4
      %v1577 = vshll.u32 %v1547, 16
      %v1579 = vrot.slane %v1577, 5
      %v1580 = vsel %vm989, %v1575, %v1579
      %v1582 = vshrl.u32 %v1548, 16
      %v1584 = vrot.slane %v1582, 4
      %v1585 = vshll.u32 %v1548, 16
      %v1587 = vrot.slane %v1585, 5
      %v1588 = vor.u32 %v1584, %v1587
      %v1589 = vrot.slane %v1588, 4
      %v1591 = vshll.u32 %v1549, 16
      %v1593 = vrot.slane %v1591, 5
      %v1594 = vsel %vm989, %v1589, %v1593
      %v1595 = vshrl.u32 %v1549, 16
      %v1597 = vrot.slane %v1595, 4
      %v1598 = vor.u32 %v1597, %v1593
      %v1599 = vrot.slane %v1598, 4
      %v1601 = vshll.u32 %v1550, 16
      %v1603 = vrot.slane %v1601, 5
      %v1604 = vsel %vm989, %v1599, %v1603
      %v1606 = vshrl.u32 %v1551, 16
      %v1608 = vrot.slane %v1606, 4
      %v1609 = vshll.u32 %v1551, 16
      %v1611 = vrot.slane %v1609, 5
      %v1612 = vor.u32 %v1608, %v1611
      %v1613 = vrot.slane %v1612, 4
      %v1615 = vshll.u32 %v1552, 16
      %v1617 = vrot.slane %v1615, 5
      %v1618 = vsel %vm989, %v1613, %v1617
      %v1619 = vshrl.u32 %v1552, 16
      %v1621 = vrot.slane %v1619, 4
      %v1622 = vor.u32 %v1621, %v1617
      %v1623 = vrot.slane %v1622, 4
      %v1625 = vshll.u32 %v1553, 16
      %v1627 = vrot.slane %v1625, 5
      %v1628 = vsel %vm989, %v1623, %v1627
      %v1630 = vshrl.u32 %v1554, 16
      %v1632 = vrot.slane %v1630, 4
      %v1633 = vshll.u32 %v1554, 16
      %v1635 = vrot.slane %v1633, 5
      %v1636 = vor.u32 %v1632, %v1635
      %v1637 = vrot.slane %v1636, 4
      %v1639 = vshll.u32 %v1555, 16
      %v1641 = vrot.slane %v1639, 5
      %v1642 = vsel %vm989, %v1637, %v1641
      %v1643 = vshrl.u32 %v1555, 16
      %v1645 = vrot.slane %v1643, 4
      %v1646 = vor.u32 %v1645, %v1641
      %v1647 = vrot.slane %v1646, 4
      %v1649 = vshll.u32 %v1556, 16
      %v1651 = vrot.slane %v1649, 5
      %v1652 = vsel %vm989, %v1647, %v1651
      %s1653 = scalar_lea.vmem %s5, 8
      %v1654 = vld [vmem:[%s1653] sm:$0x3]
      %v1655 = vunpack.c.l.b16 %v1570
      %v1656 = vunpack.c.l.b16 %v1580
      %v1657 = vunpack.c.l.b16 %v1594
      %v1658 = vunpack.c.l.b16 %v1604
      %v1659 = vunpack.c.l.b16 %v1618
      %v1660 = vunpack.c.l.b16 %v1628
      %v1661 = vunpack.c.l.b16 %v1642
      %v1662 = vunpack.c.l.b16 %v1652
      %v1663 = vpack.c.b16 %v1656, %v1655
      %v1664 = vpack.c.b16 %v1658, %v1657
      %v1665 = vpack.c.b16 %v1660, %v1659
      %v1666 = vpack.c.b16 %v1662, %v1661
      %v1668 = vsel %vm1100, %v1663, 0
      %v1671 = vsel %vm1100, %v1664, 0
      %v1674 = vsel %vm1100, %v1665, 0
      %v1677 = vsel %vm1100, %v1666, 0
      %v1680 = vsel %vm1113, %v1654, 0
      %1682 = vmatprep.subr.bf16.mxu0 0
      %1683 = vmatpush1.bf16.msra.mxu0 0
      %1684 = vmatprep.subr.bf16.mxu0 0
      %1685 = vmatpush1.bf16.msra.mxu0 0
      %1686 = vmatprep.subr.bf16.mxu0 0
      %1687 = vmatpush1.bf16.msra.mxu0 0
      %1688 = vmatprep.subr.bf16.mxu0 0
      %1689 = vmatpush1.bf16.msra.mxu0 0
      %1690 = vmatprep.subr.bf16.mxu0 0
      %1691 = vmatpush1.bf16.msra.mxu0 0
      %1692 = vmatprep.subr.bf16.mxu0 0
      %1693 = vmatpush1.bf16.msra.mxu0 0
      %1694 = vmatprep.subr.bf16.mxu0 0
      %1695 = vmatpush1.bf16.msra.mxu0 0
      %1696 = vmatprep.subr.bf16.mxu0 0
      %1697 = vmatpush1.bf16.msra.mxu0 %v1680
      %1698 = vmatprep.subr.bf16.mxu0 0
      %1699 = vmatpush2.bf16.msra.mxu0 0
      %1700 = vmatprep.subr.bf16.mxu0 0
      %1701 = vmatpush2.bf16.msra.mxu0 0
      %1702 = vmatprep.subr.bf16.mxu0 0
      %1703 = vmatpush2.bf16.msra.mxu0 0
      %1704 = vmatprep.subr.bf16.mxu0 0
      %1705 = vmatpush2.bf16.msra.mxu0 0
      %1706 = vmatprep.subr.bf16.mxu0 0
      %1707 = vmatpush2.bf16.msra.mxu0 0
      %1708 = vmatprep.subr.bf16.mxu0 0
      %1709 = vmatpush2.bf16.msra.mxu0 0
      %1710 = vmatprep.subr.bf16.mxu0 0
      %1711 = vmatpush2.bf16.msra.mxu0 0
      %1712 = vmatprep.subr.bf16.mxu0 0
      %1713 = vmatpush2.bf16.msra.mxu0 0
      %1714 = vmatprep.mubr.bf16.mxu0 0
      %1715 = vmatmul.mubr.bf16.gmra.mxu0 %v1668
      %v1716 = vpop.f32.mrf.mxu0
      %v1717 = vadd.f32 0.0, %v1716
      %v1718 = vpop.f32.mrf.mxu0
      %v1719 = vpop.f32.mrf.mxu0
      %v1720 = vadd.f32 0.0, %v1719
      %v1721 = vpop.f32.mrf.mxu0
      %1722 = vmatprep.mubr.bf16.mxu0 0
      %1723 = vmatmul.mubr.bf16.gmra.mxu0 %v1671
      %v1724 = vpop.f32.mrf.mxu0
      %v1725 = vadd.f32 0.0, %v1724
      %v1726 = vpop.f32.mrf.mxu0
      %v1727 = vpop.f32.mrf.mxu0
      %v1728 = vadd.f32 0.0, %v1727
      %v1729 = vpop.f32.mrf.mxu0
      %1730 = vmatprep.mubr.bf16.mxu0 0
      %1731 = vmatmul.mubr.bf16.gmra.mxu0 %v1674
      %v1732 = vpop.f32.mrf.mxu0
      %v1733 = vadd.f32 0.0, %v1732
      %v1734 = vpop.f32.mrf.mxu0
      %v1735 = vpop.f32.mrf.mxu0
      %v1736 = vadd.f32 0.0, %v1735
      %v1737 = vpop.f32.mrf.mxu0
      %1738 = vmatprep.mubr.bf16.mxu0 0
      %1739 = vmatmul.mubr.bf16.gmra.mxu0 %v1677
      %v1740 = vpop.f32.mrf.mxu0
      %v1741 = vadd.f32 0.0, %v1740
      %v1742 = vpop.f32.mrf.mxu0
      %v1743 = vpop.f32.mrf.mxu0
      %v1744 = vadd.f32 0.0, %v1743
      %v1745 = vpop.f32.mrf.mxu0
      %1746 = vdwg.mxu0
      %v1747 = vadd.f32 %v1537, %v1717
      %v1748 = vadd.f32 %v1538, %v1720
      %v1749 = vadd.f32 %v1539, %v1725
      %v1750 = vadd.f32 %v1540, %v1728
      %v1751 = vadd.f32 %v1541, %v1733
      %v1752 = vadd.f32 %v1542, %v1736
      %v1753 = vadd.f32 %v1543, %v1741
      %v1754 = vadd.f32 %v1544, %v1744
      %v1755 = vld [vmem:[%s911] sm:$0xe]
      %v1756 = vld [vmem:[%s911 + $0xc] sm:$0xe]
      %v1757 = vld [vmem:[%s911 + $0x18] sm:$0xe]
      %v1758 = vld [vmem:[%s911 + $0x24] sm:$0xe]
      %v1771 = vrot.slane %v1755, 5
      %v1772 = vrot.slane %v1771, 4
      %v1773 = vrot.slane %v1546, 5
      %v1774 = vsel %vm1296, %v1772, %v1773
      %v1775 = vrot.slane %v1773, 4
      %v1776 = vrot.slane %v1547, 5
      %v1777 = vsel %vm1296, %v1775, %v1776
      %v1778 = vrot.slane %v1756, 5
      %v1779 = vrot.slane %v1778, 4
      %v1780 = vrot.slane %v1549, 5
      %v1781 = vsel %vm1296, %v1779, %v1780
      %v1782 = vrot.slane %v1780, 4
      %v1783 = vrot.slane %v1550, 5
      %v1784 = vsel %vm1296, %v1782, %v1783
      %v1785 = vrot.slane %v1757, 5
      %v1786 = vrot.slane %v1785, 4
      %v1787 = vrot.slane %v1552, 5
      %v1788 = vsel %vm1296, %v1786, %v1787
      %v1789 = vrot.slane %v1787, 4
      %v1790 = vrot.slane %v1553, 5
      %v1791 = vsel %vm1296, %v1789, %v1790
      %v1792 = vrot.slane %v1758, 5
      %v1793 = vrot.slane %v1792, 4
      %v1794 = vrot.slane %v1555, 5
      %v1795 = vsel %vm1296, %v1793, %v1794
      %v1796 = vrot.slane %v1794, 4
      %v1797 = vrot.slane %v1556, 5
      %v1798 = vsel %vm1296, %v1796, %v1797
      %s1799 = scalar_lea.vmem %s5, 10
      %v1800 = vld [vmem:[%s1799] sm:$0x3]
      %v1801 = vunpack.c.l.b16 %v1774
      %v1802 = vunpack.c.l.b16 %v1777
      %v1803 = vunpack.c.l.b16 %v1781
      %v1804 = vunpack.c.l.b16 %v1784
      %v1805 = vunpack.c.l.b16 %v1788
      %v1806 = vunpack.c.l.b16 %v1791
      %v1807 = vunpack.c.l.b16 %v1795
      %v1808 = vunpack.c.l.b16 %v1798
      %v1809 = vpack.c.b16 %v1802, %v1801
      %v1810 = vpack.c.b16 %v1804, %v1803
      %v1811 = vpack.c.b16 %v1806, %v1805
      %v1812 = vpack.c.b16 %v1808, %v1807
      %v1814 = vsel %vm1100, %v1809, 0
      %v1817 = vsel %vm1100, %v1810, 0
      %v1820 = vsel %vm1100, %v1811, 0
      %v1823 = vsel %vm1100, %v1812, 0
      %v1826 = vsel %vm1113, %v1800, 0
      %1828 = vmatprep.subr.bf16.mxu0 0
      %1829 = vmatpush1.bf16.msra.mxu0 0
      %1830 = vmatprep.subr.bf16.mxu0 0
      %1831 = vmatpush1.bf16.msra.mxu0 0
      %1832 = vmatprep.subr.bf16.mxu0 0
      %1833 = vmatpush1.bf16.msra.mxu0 0
      %1834 = vmatprep.subr.bf16.mxu0 0
      %1835 = vmatpush1.bf16.msra.mxu0 0
      %1836 = vmatprep.subr.bf16.mxu0 0
      %1837 = vmatpush1.bf16.msra.mxu0 0
      %1838 = vmatprep.subr.bf16.mxu0 0
      %1839 = vmatpush1.bf16.msra.mxu0 0
      %1840 = vmatprep.subr.bf16.mxu0 0
      %1841 = vmatpush1.bf16.msra.mxu0 0
      %1842 = vmatprep.subr.bf16.mxu0 0
      %1843 = vmatpush1.bf16.msra.mxu0 %v1826
      %1844 = vmatprep.subr.bf16.mxu0 0
      %1845 = vmatpush2.bf16.msra.mxu0 0
      %1846 = vmatprep.subr.bf16.mxu0 0
      %1847 = vmatpush2.bf16.msra.mxu0 0
      %1848 = vmatprep.subr.bf16.mxu0 0
      %1849 = vmatpush2.bf16.msra.mxu0 0
      %1850 = vmatprep.subr.bf16.mxu0 0
      %1851 = vmatpush2.bf16.msra.mxu0 0
      %1852 = vmatprep.subr.bf16.mxu0 0
      %1853 = vmatpush2.bf16.msra.mxu0 0
      %1854 = vmatprep.subr.bf16.mxu0 0
      %1855 = vmatpush2.bf16.msra.mxu0 0
      %1856 = vmatprep.subr.bf16.mxu0 0
      %1857 = vmatpush2.bf16.msra.mxu0 0
      %1858 = vmatprep.subr.bf16.mxu0 0
      %1859 = vmatpush2.bf16.msra.mxu0 0
      %1860 = vmatprep.mubr.bf16.mxu0 0
      %1861 = vmatmul.mubr.bf16.gmra.mxu0 %v1814
      %v1862 = vpop.f32.mrf.mxu0
      %v1863 = vadd.f32 0.0, %v1862
      %v1864 = vpop.f32.mrf.mxu0
      %v1865 = vpop.f32.mrf.mxu0
      %v1866 = vadd.f32 0.0, %v1865
      %v1867 = vpop.f32.mrf.mxu0
      %1868 = vmatprep.mubr.bf16.mxu0 0
      %1869 = vmatmul.mubr.bf16.gmra.mxu0 %v1817
      %v1870 = vpop.f32.mrf.mxu0
      %v1871 = vadd.f32 0.0, %v1870
      %v1872 = vpop.f32.mrf.mxu0
      %v1873 = vpop.f32.mrf.mxu0
      %v1874 = vadd.f32 0.0, %v1873
      %v1875 = vpop.f32.mrf.mxu0
      %1876 = vmatprep.mubr.bf16.mxu0 0
      %1877 = vmatmul.mubr.bf16.gmra.mxu0 %v1820
      %v1878 = vpop.f32.mrf.mxu0
      %v1879 = vadd.f32 0.0, %v1878
      %v1880 = vpop.f32.mrf.mxu0
      %v1881 = vpop.f32.mrf.mxu0
      %v1882 = vadd.f32 0.0, %v1881
      %v1883 = vpop.f32.mrf.mxu0
      %1884 = vmatprep.mubr.bf16.mxu0 0
      %1885 = vmatmul.mubr.bf16.gmra.mxu0 %v1823
      %v1886 = vpop.f32.mrf.mxu0
      %v1887 = vadd.f32 0.0, %v1886
      %v1888 = vpop.f32.mrf.mxu0
      %v1889 = vpop.f32.mrf.mxu0
      %v1890 = vadd.f32 0.0, %v1889
      %v1891 = vpop.f32.mrf.mxu0
      %1892 = vdwg.mxu0
      %v1893 = vadd.f32 %v1747, %v1863
      %v1894 = vadd.f32 %v1748, %v1866
      %v1895 = vadd.f32 %v1749, %v1871
      %v1896 = vadd.f32 %v1750, %v1874
      %v1897 = vadd.f32 %v1751, %v1879
      %v1898 = vadd.f32 %v1752, %v1882
      %v1899 = vadd.f32 %v1753, %v1887
      %v1900 = vadd.f32 %v1754, %v1890
      %s1901 = scalar_lea.vmem [#allocation2], 24
      %v1902 = vld [vmem:[%s1901] sm:$0xf]
      %v1903 = vld [vmem:[%s1901 + $0x4] sm:$0xf]
      %v1904 = vld [vmem:[%s1901 + $0xc] sm:$0xf]
      %v1905 = vld [vmem:[%s1901 + $0x10] sm:$0xf]
      %v1906 = vld [vmem:[%s1901 + $0x18] sm:$0xf]
      %v1907 = vld [vmem:[%s1901 + $0x1c] sm:$0xf]
      %v1908 = vld [vmem:[%s1901 + $0x24] sm:$0xf]
      %v1909 = vld [vmem:[%s1901 + $0x28] sm:$0xf]
      %s1910 = scalar_lea.vmem %s5, 12
      %v1911 = vld [vmem:[%s1910] sm:$0x3]
      %v1920 = vunpack.c.l.b16 %v1902
      %v1921 = vunpack.c.l.b16 %v1903
      %v1922 = vunpack.c.l.b16 %v1904
      %v1923 = vunpack.c.l.b16 %v1905
      %v1924 = vunpack.c.l.b16 %v1906
      %v1925 = vunpack.c.l.b16 %v1907
      %v1926 = vunpack.c.l.b16 %v1908
      %v1927 = vunpack.c.l.b16 %v1909
      %v1928 = vpack.c.b16 %v1921, %v1920
      %v1929 = vpack.c.b16 %v1923, %v1922
      %v1930 = vpack.c.b16 %v1925, %v1924
      %v1931 = vpack.c.b16 %v1927, %v1926
      %v1933 = vsel %vm1100, %v1928, 0
      %v1936 = vsel %vm1100, %v1929, 0
      %v1939 = vsel %vm1100, %v1930, 0
      %v1942 = vsel %vm1100, %v1931, 0
      %v1945 = vsel %vm1113, %v1911, 0
      %1947 = vmatprep.subr.bf16.mxu0 0
      %1948 = vmatpush1.bf16.msra.mxu0 0
      %1949 = vmatprep.subr.bf16.mxu0 0
      %1950 = vmatpush1.bf16.msra.mxu0 0
      %1951 = vmatprep.subr.bf16.mxu0 0
      %1952 = vmatpush1.bf16.msra.mxu0 0
      %1953 = vmatprep.subr.bf16.mxu0 0
      %1954 = vmatpush1.bf16.msra.mxu0 0
      %1955 = vmatprep.subr.bf16.mxu0 0
      %1956 = vmatpush1.bf16.msra.mxu0 0
      %1957 = vmatprep.subr.bf16.mxu0 0
      %1958 = vmatpush1.bf16.msra.mxu0 0
      %1959 = vmatprep.subr.bf16.mxu0 0
      %1960 = vmatpush1.bf16.msra.mxu0 0
      %1961 = vmatprep.subr.bf16.mxu0 0
      %1962 = vmatpush1.bf16.msra.mxu0 %v1945
      %1963 = vmatprep.subr.bf16.mxu0 0
      %1964 = vmatpush2.bf16.msra.mxu0 0
      %1965 = vmatprep.subr.bf16.mxu0 0
      %1966 = vmatpush2.bf16.msra.mxu0 0
      %1967 = vmatprep.subr.bf16.mxu0 0
      %1968 = vmatpush2.bf16.msra.mxu0 0
      %1969 = vmatprep.subr.bf16.mxu0 0
      %1970 = vmatpush2.bf16.msra.mxu0 0
      %1971 = vmatprep.subr.bf16.mxu0 0
      %1972 = vmatpush2.bf16.msra.mxu0 0
      %1973 = vmatprep.subr.bf16.mxu0 0
      %1974 = vmatpush2.bf16.msra.mxu0 0
      %1975 = vmatprep.subr.bf16.mxu0 0
      %1976 = vmatpush2.bf16.msra.mxu0 0
      %1977 = vmatprep.subr.bf16.mxu0 0
      %1978 = vmatpush2.bf16.msra.mxu0 0
      %1979 = vmatprep.mubr.bf16.mxu0 0
      %1980 = vmatmul.mubr.bf16.gmra.mxu0 %v1933
      %v1981 = vpop.f32.mrf.mxu0
      %v1982 = vadd.f32 0.0, %v1981
      %v1983 = vpop.f32.mrf.mxu0
      %v1984 = vpop.f32.mrf.mxu0
      %v1985 = vadd.f32 0.0, %v1984
      %v1986 = vpop.f32.mrf.mxu0
      %1987 = vmatprep.mubr.bf16.mxu0 0
      %1988 = vmatmul.mubr.bf16.gmra.mxu0 %v1936
      %v1989 = vpop.f32.mrf.mxu0
      %v1990 = vadd.f32 0.0, %v1989
      %v1991 = vpop.f32.mrf.mxu0
      %v1992 = vpop.f32.mrf.mxu0
      %v1993 = vadd.f32 0.0, %v1992
      %v1994 = vpop.f32.mrf.mxu0
      %1995 = vmatprep.mubr.bf16.mxu0 0
      %1996 = vmatmul.mubr.bf16.gmra.mxu0 %v1939
      %v1997 = vpop.f32.mrf.mxu0
      %v1998 = vadd.f32 0.0, %v1997
      %v1999 = vpop.f32.mrf.mxu0
      %v2000 = vpop.f32.mrf.mxu0
      %v2001 = vadd.f32 0.0, %v2000
      %v2002 = vpop.f32.mrf.mxu0
      %2003 = vmatprep.mubr.bf16.mxu0 0
      %2004 = vmatmul.mubr.bf16.gmra.mxu0 %v1942
      %v2005 = vpop.f32.mrf.mxu0
      %v2006 = vadd.f32 0.0, %v2005
      %v2007 = vpop.f32.mrf.mxu0
      %v2008 = vpop.f32.mrf.mxu0
      %v2009 = vadd.f32 0.0, %v2008
      %v2010 = vpop.f32.mrf.mxu0
      %2011 = vdwg.mxu0
      %v2012 = vadd.f32 %v1893, %v1982
      %v2013 = vadd.f32 %v1894, %v1985
      %v2014 = vadd.f32 %v1895, %v1990
      %v2015 = vadd.f32 %v1896, %v1993
      %v2016 = vadd.f32 %v1897, %v1998
      %v2017 = vadd.f32 %v1898, %v2001
      %v2018 = vadd.f32 %v1899, %v2006
      %v2019 = vadd.f32 %v1900, %v2009
      %v2020 = vld [vmem:[%s1901] sm:$0xf]
      %v2021 = vld [vmem:[%s1901 + $0x4] sm:$0xf]
      %v2022 = vld [vmem:[%s1901 + $0x8] sm:$0x1]
      %v2023 = vld [vmem:[%s1901 + $0xc] sm:$0xf]
      %v2024 = vld [vmem:[%s1901 + $0x10] sm:$0xf]
      %v2025 = vld [vmem:[%s1901 + $0x14] sm:$0x1]
      %v2026 = vld [vmem:[%s1901 + $0x18] sm:$0xf]
      %v2027 = vld [vmem:[%s1901 + $0x1c] sm:$0xf]
      %v2028 = vld [vmem:[%s1901 + $0x20] sm:$0x1]
      %v2029 = vld [vmem:[%s1901 + $0x24] sm:$0xf]
      %v2030 = vld [vmem:[%s1901 + $0x28] sm:$0xf]
      %v2031 = vld [vmem:[%s1901 + $0x2c] sm:$0x1]
      %v2033 = vshrl.u32 %v2020, 16
      %v2035 = vrot.slane %v2033, 4
      %v2036 = vshll.u32 %v2020, 16
      %v2038 = vrot.slane %v2036, 5
      %v2039 = vor.u32 %v2035, %v2038
      %v2040 = vrot.slane %v2039, 4
      %v2042 = vshll.u32 %v2021, 16
      %v2044 = vrot.slane %v2042, 5
      %v2045 = vsel %vm989, %v2040, %v2044
      %v2046 = vshrl.u32 %v2021, 16
      %v2048 = vrot.slane %v2046, 4
      %v2049 = vor.u32 %v2048, %v2044
      %v2050 = vrot.slane %v2049, 4
      %v2052 = vshll.u32 %v2022, 16
      %v2054 = vrot.slane %v2052, 5
      %v2055 = vsel %vm989, %v2050, %v2054
      %v2057 = vshrl.u32 %v2023, 16
      %v2059 = vrot.slane %v2057, 4
      %v2060 = vshll.u32 %v2023, 16
      %v2062 = vrot.slane %v2060, 5
      %v2063 = vor.u32 %v2059, %v2062
      %v2064 = vrot.slane %v2063, 4
      %v2066 = vshll.u32 %v2024, 16
      %v2068 = vrot.slane %v2066, 5
      %v2069 = vsel %vm989, %v2064, %v2068
      %v2070 = vshrl.u32 %v2024, 16
      %v2072 = vrot.slane %v2070, 4
      %v2073 = vor.u32 %v2072, %v2068
      %v2074 = vrot.slane %v2073, 4
      %v2076 = vshll.u32 %v2025, 16
      %v2078 = vrot.slane %v2076, 5
      %v2079 = vsel %vm989, %v2074, %v2078
      %v2081 = vshrl.u32 %v2026, 16
      %v2083 = vrot.slane %v2081, 4
      %v2084 = vshll.u32 %v2026, 16
      %v2086 = vrot.slane %v2084, 5
      %v2087 = vor.u32 %v2083, %v2086
      %v2088 = vrot.slane %v2087, 4
      %v2090 = vshll.u32 %v2027, 16
      %v2092 = vrot.slane %v2090, 5
      %v2093 = vsel %vm989, %v2088, %v2092
      %v2094 = vshrl.u32 %v2027, 16
      %v2096 = vrot.slane %v2094, 4
      %v2097 = vor.u32 %v2096, %v2092
      %v2098 = vrot.slane %v2097, 4
      %v2100 = vshll.u32 %v2028, 16
      %v2102 = vrot.slane %v2100, 5
      %v2103 = vsel %vm989, %v2098, %v2102
      %v2105 = vshrl.u32 %v2029, 16
      %v2107 = vrot.slane %v2105, 4
      %v2108 = vshll.u32 %v2029, 16
      %v2110 = vrot.slane %v2108, 5
      %v2111 = vor.u32 %v2107, %v2110
      %v2112 = vrot.slane %v2111, 4
      %v2114 = vshll.u32 %v2030, 16
      %v2116 = vrot.slane %v2114, 5
      %v2117 = vsel %vm989, %v2112, %v2116
      %v2118 = vshrl.u32 %v2030, 16
      %v2120 = vrot.slane %v2118, 4
      %v2121 = vor.u32 %v2120, %v2116
      %v2122 = vrot.slane %v2121, 4
      %v2124 = vshll.u32 %v2031, 16
      %v2126 = vrot.slane %v2124, 5
      %v2127 = vsel %vm989, %v2122, %v2126
      %s2128 = scalar_lea.vmem %s5, 14
      %v2129 = vld [vmem:[%s2128] sm:$0x3]
      %v2130 = vunpack.c.l.b16 %v2045
      %v2131 = vunpack.c.l.b16 %v2055
      %v2132 = vunpack.c.l.b16 %v2069
      %v2133 = vunpack.c.l.b16 %v2079
      %v2134 = vunpack.c.l.b16 %v2093
      %v2135 = vunpack.c.l.b16 %v2103
      %v2136 = vunpack.c.l.b16 %v2117
      %v2137 = vunpack.c.l.b16 %v2127
      %v2138 = vpack.c.b16 %v2131, %v2130
      %v2139 = vpack.c.b16 %v2133, %v2132
      %v2140 = vpack.c.b16 %v2135, %v2134
      %v2141 = vpack.c.b16 %v2137, %v2136
      %v2143 = vsel %vm1100, %v2138, 0
      %v2146 = vsel %vm1100, %v2139, 0
      %v2149 = vsel %vm1100, %v2140, 0
      %v2152 = vsel %vm1100, %v2141, 0
      %v2155 = vsel %vm1113, %v2129, 0
      %2157 = vmatprep.subr.bf16.mxu0 0
      %2158 = vmatpush1.bf16.msra.mxu0 0
      %2159 = vmatprep.subr.bf16.mxu0 0
      %2160 = vmatpush1.bf16.msra.mxu0 0
      %2161 = vmatprep.subr.bf16.mxu0 0
      %2162 = vmatpush1.bf16.msra.mxu0 0
      %2163 = vmatprep.subr.bf16.mxu0 0
      %2164 = vmatpush1.bf16.msra.mxu0 0
      %2165 = vmatprep.subr.bf16.mxu0 0
      %2166 = vmatpush1.bf16.msra.mxu0 0
      %2167 = vmatprep.subr.bf16.mxu0 0
      %2168 = vmatpush1.bf16.msra.mxu0 0
      %2169 = vmatprep.subr.bf16.mxu0 0
      %2170 = vmatpush1.bf16.msra.mxu0 0
      %2171 = vmatprep.subr.bf16.mxu0 0
      %2172 = vmatpush1.bf16.msra.mxu0 %v2155
      %2173 = vmatprep.subr.bf16.mxu0 0
      %2174 = vmatpush2.bf16.msra.mxu0 0
      %2175 = vmatprep.subr.bf16.mxu0 0
      %2176 = vmatpush2.bf16.msra.mxu0 0
      %2177 = vmatprep.subr.bf16.mxu0 0
      %2178 = vmatpush2.bf16.msra.mxu0 0
      %2179 = vmatprep.subr.bf16.mxu0 0
      %2180 = vmatpush2.bf16.msra.mxu0 0
      %2181 = vmatprep.subr.bf16.mxu0 0
      %2182 = vmatpush2.bf16.msra.mxu0 0
      %2183 = vmatprep.subr.bf16.mxu0 0
      %2184 = vmatpush2.bf16.msra.mxu0 0
      %2185 = vmatprep.subr.bf16.mxu0 0
      %2186 = vmatpush2.bf16.msra.mxu0 0
      %2187 = vmatprep.subr.bf16.mxu0 0
      %2188 = vmatpush2.bf16.msra.mxu0 0
      %2189 = vmatprep.mubr.bf16.mxu0 0
      %2190 = vmatmul.mubr.bf16.gmra.mxu0 %v2143
      %v2191 = vpop.f32.mrf.mxu0
      %v2192 = vadd.f32 0.0, %v2191
      %v2193 = vpop.f32.mrf.mxu0
      %v2194 = vpop.f32.mrf.mxu0
      %v2195 = vadd.f32 0.0, %v2194
      %v2196 = vpop.f32.mrf.mxu0
      %2197 = vmatprep.mubr.bf16.mxu0 0
      %2198 = vmatmul.mubr.bf16.gmra.mxu0 %v2146
      %v2199 = vpop.f32.mrf.mxu0
      %v2200 = vadd.f32 0.0, %v2199
      %v2201 = vpop.f32.mrf.mxu0
      %v2202 = vpop.f32.mrf.mxu0
      %v2203 = vadd.f32 0.0, %v2202
      %v2204 = vpop.f32.mrf.mxu0
      %2205 = vmatprep.mubr.bf16.mxu0 0
      %2206 = vmatmul.mubr.bf16.gmra.mxu0 %v2149
      %v2207 = vpop.f32.mrf.mxu0
      %v2208 = vadd.f32 0.0, %v2207
      %v2209 = vpop.f32.mrf.mxu0
      %v2210 = vpop.f32.mrf.mxu0
      %v2211 = vadd.f32 0.0, %v2210
      %v2212 = vpop.f32.mrf.mxu0
      %2213 = vmatprep.mubr.bf16.mxu0 0
      %2214 = vmatmul.mubr.bf16.gmra.mxu0 %v2152
      %v2215 = vpop.f32.mrf.mxu0
      %v2216 = vadd.f32 0.0, %v2215
      %v2217 = vpop.f32.mrf.mxu0
      %v2218 = vpop.f32.mrf.mxu0
      %v2219 = vadd.f32 0.0, %v2218
      %v2220 = vpop.f32.mrf.mxu0
      %2221 = vdwg.mxu0
      %v2222 = vadd.f32 %v2012, %v2192
      %v2223 = vadd.f32 %v2013, %v2195
      %v2224 = vadd.f32 %v2014, %v2200
      %v2225 = vadd.f32 %v2015, %v2203
      %v2226 = vadd.f32 %v2016, %v2208
      %v2227 = vadd.f32 %v2017, %v2211
      %v2228 = vadd.f32 %v2018, %v2216
      %v2229 = vadd.f32 %v2019, %v2219
      %v2230 = vld [vmem:[%s1901] sm:$0xe]
      %v2231 = vld [vmem:[%s1901 + $0xc] sm:$0xe]
      %v2232 = vld [vmem:[%s1901 + $0x18] sm:$0xe]
      %v2233 = vld [vmem:[%s1901 + $0x24] sm:$0xe]
      %v2246 = vrot.slane %v2230, 5
      %v2247 = vrot.slane %v2246, 4
      %v2248 = vrot.slane %v2021, 5
      %v2249 = vsel %vm1296, %v2247, %v2248
      %v2250 = vrot.slane %v2248, 4
      %v2251 = vrot.slane %v2022, 5
      %v2252 = vsel %vm1296, %v2250, %v2251
      %v2253 = vrot.slane %v2231, 5
      %v2254 = vrot.slane %v2253, 4
      %v2255 = vrot.slane %v2024, 5
      %v2256 = vsel %vm1296, %v2254, %v2255
      %v2257 = vrot.slane %v2255, 4
      %v2258 = vrot.slane %v2025, 5
      %v2259 = vsel %vm1296, %v2257, %v2258
      %v2260 = vrot.slane %v2232, 5
      %v2261 = vrot.slane %v2260, 4
      %v2262 = vrot.slane %v2027, 5
      %v2263 = vsel %vm1296, %v2261, %v2262
      %v2264 = vrot.slane %v2262, 4
      %v2265 = vrot.slane %v2028, 5
      %v2266 = vsel %vm1296, %v2264, %v2265
      %v2267 = vrot.slane %v2233, 5
      %v2268 = vrot.slane %v2267, 4
      %v2269 = vrot.slane %v2030, 5
      %v2270 = vsel %vm1296, %v2268, %v2269
      %v2271 = vrot.slane %v2269, 4
      %v2272 = vrot.slane %v2031, 5
      %v2273 = vsel %vm1296, %v2271, %v2272
      %s2274 = scalar_lea.vmem %s5, 16
      %v2275 = vld [vmem:[%s2274] sm:$0x3]
      %v2276 = vunpack.c.l.b16 %v2249
      %v2277 = vunpack.c.l.b16 %v2252
      %v2278 = vunpack.c.l.b16 %v2256
      %v2279 = vunpack.c.l.b16 %v2259
      %v2280 = vunpack.c.l.b16 %v2263
      %v2281 = vunpack.c.l.b16 %v2266
      %v2282 = vunpack.c.l.b16 %v2270
      %v2283 = vunpack.c.l.b16 %v2273
      %v2284 = vpack.c.b16 %v2277, %v2276
      %v2285 = vpack.c.b16 %v2279, %v2278
      %v2286 = vpack.c.b16 %v2281, %v2280
      %v2287 = vpack.c.b16 %v2283, %v2282
      %v2289 = vsel %vm1100, %v2284, 0
      %v2292 = vsel %vm1100, %v2285, 0
      %v2295 = vsel %vm1100, %v2286, 0
      %v2298 = vsel %vm1100, %v2287, 0
      %v2301 = vsel %vm1113, %v2275, 0
      %2303 = vmatprep.subr.bf16.mxu0 0
      %2304 = vmatpush1.bf16.msra.mxu0 0
      %2305 = vmatprep.subr.bf16.mxu0 0
      %2306 = vmatpush1.bf16.msra.mxu0 0
      %2307 = vmatprep.subr.bf16.mxu0 0
      %2308 = vmatpush1.bf16.msra.mxu0 0
      %2309 = vmatprep.subr.bf16.mxu0 0
      %2310 = vmatpush1.bf16.msra.mxu0 0
      %2311 = vmatprep.subr.bf16.mxu0 0
      %2312 = vmatpush1.bf16.msra.mxu0 0
      %2313 = vmatprep.subr.bf16.mxu0 0
      %2314 = vmatpush1.bf16.msra.mxu0 0
      %2315 = vmatprep.subr.bf16.mxu0 0
      %2316 = vmatpush1.bf16.msra.mxu0 0
      %2317 = vmatprep.subr.bf16.mxu0 0
      %2318 = vmatpush1.bf16.msra.mxu0 %v2301
      %2319 = vmatprep.subr.bf16.mxu0 0
      %2320 = vmatpush2.bf16.msra.mxu0 0
      %2321 = vmatprep.subr.bf16.mxu0 0
      %2322 = vmatpush2.bf16.msra.mxu0 0
      %2323 = vmatprep.subr.bf16.mxu0 0
      %2324 = vmatpush2.bf16.msra.mxu0 0
      %2325 = vmatprep.subr.bf16.mxu0 0
      %2326 = vmatpush2.bf16.msra.mxu0 0
      %2327 = vmatprep.subr.bf16.mxu0 0
      %2328 = vmatpush2.bf16.msra.mxu0 0
      %2329 = vmatprep.subr.bf16.mxu0 0
      %2330 = vmatpush2.bf16.msra.mxu0 0
      %2331 = vmatprep.subr.bf16.mxu0 0
      %2332 = vmatpush2.bf16.msra.mxu0 0
      %2333 = vmatprep.subr.bf16.mxu0 0
      %2334 = vmatpush2.bf16.msra.mxu0 0
      %2335 = vmatprep.mubr.bf16.mxu0 0
      %2336 = vmatmul.mubr.bf16.gmra.mxu0 %v2289
      %v2337 = vpop.f32.mrf.mxu0
      %v2338 = vadd.f32 0.0, %v2337
      %v2339 = vpop.f32.mrf.mxu0
      %v2340 = vpop.f32.mrf.mxu0
      %v2341 = vadd.f32 0.0, %v2340
      %v2342 = vpop.f32.mrf.mxu0
      %2343 = vmatprep.mubr.bf16.mxu0 0
      %2344 = vmatmul.mubr.bf16.gmra.mxu0 %v2292
      %v2345 = vpop.f32.mrf.mxu0
      %v2346 = vadd.f32 0.0, %v2345
      %v2347 = vpop.f32.mrf.mxu0
      %v2348 = vpop.f32.mrf.mxu0
      %v2349 = vadd.f32 0.0, %v2348
      %v2350 = vpop.f32.mrf.mxu0
      %2351 = vmatprep.mubr.bf16.mxu0 0
      %2352 = vmatmul.mubr.bf16.gmra.mxu0 %v2295
      %v2353 = vpop.f32.mrf.mxu0
      %v2354 = vadd.f32 0.0, %v2353
      %v2355 = vpop.f32.mrf.mxu0
      %v2356 = vpop.f32.mrf.mxu0
      %v2357 = vadd.f32 0.0, %v2356
      %v2358 = vpop.f32.mrf.mxu0
      %2359 = vmatprep.mubr.bf16.mxu0 0
      %2360 = vmatmul.mubr.bf16.gmra.mxu0 %v2298
      %v2361 = vpop.f32.mrf.mxu0
      %v2362 = vadd.f32 0.0, %v2361
      %v2363 = vpop.f32.mrf.mxu0
      %v2364 = vpop.f32.mrf.mxu0
      %v2365 = vadd.f32 0.0, %v2364
      %v2366 = vpop.f32.mrf.mxu0
      %2367 = vdwg.mxu0
      %v2368 = vadd.f32 %v2222, %v2338
      %v2369 = vadd.f32 %v2223, %v2341
      %v2370 = vadd.f32 %v2224, %v2346
      %v2371 = vadd.f32 %v2225, %v2349
      %v2372 = vadd.f32 %v2226, %v2354
      %v2373 = vadd.f32 %v2227, %v2357
      %v2374 = vadd.f32 %v2228, %v2362
      %v2375 = vadd.f32 %v2229, %v2365
      %v2376 = vld [vmem:[%s6] sm:$0x1]
      %v2378 = vlaneseq
      %v2379 = vshrl.u32 %v2378, 7
      %v2380 = vsub.s32 0, %v2379
      %v2381 = vrot.slane %v2376, %v2380
      %v2383 = vadd.f32 %v2368, %v2381
      %v2384 = vadd.f32 %v2369, %v2381
      %v2385 = vadd.f32 %v2370, %v2381
      %v2386 = vadd.f32 %v2371, %v2381
      %v2387 = vadd.f32 %v2372, %v2381
      %v2388 = vadd.f32 %v2373, %v2381
      %v2389 = vadd.f32 %v2374, %v2381
      %v2390 = vadd.f32 %v2375, %v2381
      %v2391 = vmax.f32 %v2383, 0.0
      %v2392 = vmax.f32 %v2384, 0.0
      %v2393 = vmax.f32 %v2385, 0.0
      %v2394 = vmax.f32 %v2386, 0.0
      %v2395 = vmax.f32 %v2387, 0.0
      %v2396 = vmax.f32 %v2388, 0.0
      %v2397 = vmax.f32 %v2389, 0.0
      %v2398 = vmax.f32 %v2390, 0.0
      %v2399 = vpack.c.bf16 %v2392, %v2391
      %v2400 = vpack.c.bf16 %v2394, %v2393
      %v2401 = vpack.c.bf16 %v2396, %v2395
      %v2402 = vpack.c.bf16 %v2398, %v2397
      %v2403 = vld [vmem:[%s7] sm:$0x3]
      %v2404 = vld [vmem:[%s8] sm:$0x1]
      %v2406 = vlaneseq
      %v2407 = vshrl.u32 %v2406, 7
      %v2408 = vsub.s32 0, %v2407
      %v2409 = vrot.slane %v2404, %v2408
      %v2412 = vsel %vm1100, %v2399, 0
      %v2415 = vsel %vm1100, %v2400, 0
      %v2418 = vsel %vm1100, %v2401, 0
      %v2421 = vsel %vm1100, %v2402, 0
      %v2424 = vsel %vm1113, %v2403, 0
      %2426 = vmatprep.subr.bf16.mxu0 0
      %2427 = vmatpush1.bf16.msra.mxu0 0
      %2428 = vmatprep.subr.bf16.mxu0 0
      %2429 = vmatpush1.bf16.msra.mxu0 0
      %2430 = vmatprep.subr.bf16.mxu0 0
      %2431 = vmatpush1.bf16.msra.mxu0 0
      %2432 = vmatprep.subr.bf16.mxu0 0
      %2433 = vmatpush1.bf16.msra.mxu0 0
      %2434 = vmatprep.subr.bf16.mxu0 0
      %2435 = vmatpush1.bf16.msra.mxu0 0
      %2436 = vmatprep.subr.bf16.mxu0 0
      %2437 = vmatpush1.bf16.msra.mxu0 0
      %2438 = vmatprep.subr.bf16.mxu0 0
      %2439 = vmatpush1.bf16.msra.mxu0 0
      %2440 = vmatprep.subr.bf16.mxu0 0
      %2441 = vmatpush1.bf16.msra.mxu0 %v2424
      %2442 = vmatprep.subr.bf16.mxu0 0
      %2443 = vmatpush2.bf16.msra.mxu0 0
      %2444 = vmatprep.subr.bf16.mxu0 0
      %2445 = vmatpush2.bf16.msra.mxu0 0
      %2446 = vmatprep.subr.bf16.mxu0 0
      %2447 = vmatpush2.bf16.msra.mxu0 0
      %2448 = vmatprep.subr.bf16.mxu0 0
      %2449 = vmatpush2.bf16.msra.mxu0 0
      %2450 = vmatprep.subr.bf16.mxu0 0
      %2451 = vmatpush2.bf16.msra.mxu0 0
      %2452 = vmatprep.subr.bf16.mxu0 0
      %2453 = vmatpush2.bf16.msra.mxu0 0
      %2454 = vmatprep.subr.bf16.mxu0 0
      %2455 = vmatpush2.bf16.msra.mxu0 0
      %2456 = vmatprep.subr.bf16.mxu0 0
      %2457 = vmatpush2.bf16.msra.mxu0 0
      %2458 = vmatprep.mubr.bf16.mxu0 0
      %2459 = vmatmul.mubr.bf16.gmra.mxu0 %v2412
      %v2460 = vpop.f32.mrf.mxu0
      %v2461 = vadd.f32 %v2409, %v2460
      %v2462 = vpop.f32.mrf.mxu0
      %v2463 = vpop.f32.mrf.mxu0
      %v2464 = vadd.f32 %v2409, %v2463
      %v2465 = vpop.f32.mrf.mxu0
      %2466 = vmatprep.mubr.bf16.mxu0 0
      %2467 = vmatmul.mubr.bf16.gmra.mxu0 %v2415
      %v2468 = vpop.f32.mrf.mxu0
      %v2469 = vadd.f32 %v2409, %v2468
      %v2470 = vpop.f32.mrf.mxu0
      %v2471 = vpop.f32.mrf.mxu0
      %v2472 = vadd.f32 %v2409, %v2471
      %v2473 = vpop.f32.mrf.mxu0
      %2474 = vmatprep.mubr.bf16.mxu0 0
      %2475 = vmatmul.mubr.bf16.gmra.mxu0 %v2418
      %v2476 = vpop.f32.mrf.mxu0
      %v2477 = vadd.f32 %v2409, %v2476
      %v2478 = vpop.f32.mrf.mxu0
      %v2479 = vpop.f32.mrf.mxu0
      %v2480 = vadd.f32 %v2409, %v2479
      %v2481 = vpop.f32.mrf.mxu0
      %2482 = vmatprep.mubr.bf16.mxu0 0
      %2483 = vmatmul.mubr.bf16.gmra.mxu0 %v2421
      %v2484 = vpop.f32.mrf.mxu0
      %v2485 = vadd.f32 %v2409, %v2484
      %v2486 = vpop.f32.mrf.mxu0
      %v2487 = vpop.f32.mrf.mxu0
      %v2488 = vadd.f32 %v2409, %v2487
      %v2489 = vpop.f32.mrf.mxu0
      %2490 = vdwg.mxu0
      %v2491 = vunpack.c.l.bf16 %v504
      %v2492 = vunpack.c.l.bf16 %v505
      %v2493 = vunpack.c.l.bf16 %v506
      %v2494 = vunpack.c.l.bf16 %v507
      %v2495 = vunpack.c.l.bf16 %v508
      %v2496 = vunpack.c.l.bf16 %v509
      %v2497 = vunpack.c.l.bf16 %v510
      %v2498 = vunpack.c.l.bf16 %v511
      %v2499 = vadd.f32 %v2461, %v2491
      %v2500 = vadd.f32 %v2464, %v2492
      %v2501 = vadd.f32 %v2469, %v2493
      %v2502 = vadd.f32 %v2472, %v2494
      %v2503 = vadd.f32 %v2477, %v2495
      %v2504 = vadd.f32 %v2480, %v2496
      %v2505 = vadd.f32 %v2485, %v2497
      %v2506 = vadd.f32 %v2488, %v2498
      %v2507 = vmax.f32 %v2499, 0.0
      %v2508 = vmax.f32 %v2500, 0.0
      %v2509 = vmax.f32 %v2501, 0.0
      %v2510 = vmax.f32 %v2502, 0.0
      %v2511 = vmax.f32 %v2503, 0.0
      %v2512 = vmax.f32 %v2504, 0.0
      %v2513 = vmax.f32 %v2505, 0.0
      %v2514 = vmax.f32 %v2506, 0.0
      %2515 = vst.msk [vmem:[%s499] sm:$0xff] %vm538, %v2507
      %2516 = vst.msk [vmem:[%s499 + $0x8] sm:$0xff] %vm538, %v2508
      %2517 = vst.msk [vmem:[%s499 + $0x10] sm:$0xff] %vm538, %v2509
      %2518 = vst.msk [vmem:[%s499 + $0x18] sm:$0xff] %vm538, %v2510
      %2519 = vst.msk [vmem:[%s499 + $0x20] sm:$0xff] %vm538, %v2511
      %2520 = vst.msk [vmem:[%s499 + $0x28] sm:$0xff] %vm538, %v2512
      %2521 = vst.msk [vmem:[%s499 + $0x30] sm:$0xff] %vm538, %v2513
      %2522 = vst.msk [vmem:[%s499 + $0x38] sm:$0xff] %vm538, %v2514
      %s2523 = smul.u32 4, %s25
      %p2524 = scmp.lt.s32.totalorder %s24, 1
      %s2525 = scalar_select %p2524, %s24, 1
      %p2526 = scmp.lt.s32.totalorder %s2523, 15
      %s2527 = scalar_select %p2526, %s2523, 15
      %s2528 = smul.addr %s2527, 2
      %s2529 = smul.addr %s2525, 32
      %s2530 = sadd.s32 %s2528, %s2529
      %s2531 = smul.addr %s2530, 8
      %s2532 = scalar_lea.vmem %s9, %s2531
      // Predicated region
      $region57: #{tpu_custom_call.1} parent=55 // pred_check
        %p2533 = pneg %p278
      $region58: #{tpu_custom_call.1} parent=55 // pred_check_branch
        %2535 = sbr.rel (%p2533) target = $region60
      $region59: #{tpu_custom_call.1} parent=55 // pred_region
        %s2536 = smul.u32 4, %s25
      $region60: #{tpu_custom_call.1} parent=55 // pred_fallthru
        _
    $region56: #{tpu_custom_call.1} parent=5 // pred_fallthru
      _
    %p2537 = scmp.le.s32.totalorder 2, %s15
    // Predicated region
    $region61: #{tpu_custom_call.1} parent=5 // pred_check
      %p2538 = pneg %p2537
    $region62: #{tpu_custom_call.1} parent=5 // pred_check_branch
      %2540 = sbr.rel (%p2538) target = $region64
    $region63: #{tpu_custom_call.1} parent=5 // pred_region
      %s2541 = ssub.s32 %s15, 2
      // Predicated region
      $region65: #{tpu_custom_call.1} parent=63 // pred_check
        %p2542 = pneg %p284
      $region66: #{tpu_custom_call.1} parent=63 // pred_check_branch
        %2544 = sbr.rel (%p2542) target = $region68
      $region67: #{tpu_custom_call.1} parent=63 // pred_region
        %s2545 = smul.u32 4, %s27
        %p2546 = scmp.lt.s32.totalorder %s26, 1
        %s2547 = scalar_select %p2546, %s26, 1
        %p2548 = scmp.lt.s32.totalorder %s2545, 15
        %s2549 = scalar_select %p2548, %s2545, 15
        %s2550 = smul.addr %s2549, 2
        %s2551 = smul.addr %s2547, 32
        %s2552 = sadd.s32 %s2550, %s2551
        %s2553 = smul.addr %s2552, 8
        %s2554 = scalar_lea.vmem %s9, %s2553
      $region68: #{tpu_custom_call.1} parent=63 // pred_fallthru
        _
    $region64: #{tpu_custom_call.1} parent=5 // pred_fallthru
      _
  $region6: #{tpu_custom_call.1} parent=0 // loop_footer
    %s19 = sadd.s32 1, %s15
  $region7: #{tpu_custom_call.1} parent=0 // loop_footer_branch
    %14 = sbr.rel target = $region3
  $region8: #{tpu_custom_call.1} parent=0 // loop_exit
    _

</llo_original>
